<compile_context>
chip_gen: v7x
topology: tpu7x:2x2x1
jax: 0.10.0
libtpu: 0.0.40
codegen_flags: <defaults>
</compile_context>

<pallas_src>
import jax
import jax.numpy as jnp
import numpy as np
from jax.experimental import pallas as pl
from jax.experimental.pallas import tpu as pltpu

KERNEL_SIZES = (3, 4, 5)
_LANE = 128
_BF16_SUBLANE = 16   # bf16 packs two rows per sublane -> 16-row batch granularity


def _round_up(x, m):
    return ((x + m - 1) // m) * m


def _vmem_budget_and_limit():
    """Generation-aware VMEM budgeting (v5e/v6e: 128 MiB physical, v7x: 64 MiB)."""
    try:
        cap = int(pltpu.get_tpu_info().vmem_capacity_bytes)
    except Exception:
        cap = 64 * 1024 * 1024          # conservative fallback (v7x size)
    budget = min(int(cap * 0.40), 48 * 1024 * 1024)
    limit = max(32 * 1024 * 1024, min(int(cap * 0.75), 96 * 1024 * 1024))
    return budget, limit


def _choose_batch_tile(B, Lp, T, Ep, Hpad, NPad, kmax, itemsize, budget):
    """Largest 16-aligned batch tile whose per-tile working set fits `budget`, while keeping
    at least a 2-step grid (v7x megacore) whenever the batch is big enough."""
    per_row = (2 * Lp * Ep * itemsize       # double-buffered (Lp, TB, Ep) input block
               + T * kmax * Ep * itemsize   # in-kernel im2col slab (bf16)
               + 2 * T * Hpad * 4           # f32 matmul result (headroom for overlap)
               + 2 * NPad * 4)              # double-buffered output row
    fixed = kmax * Ep * NPad * itemsize + NPad * 4 + (2 << 20)   # weights + bias + headroom
    avail = max(budget - fixed, 1 << 20)
    tb = int(avail // max(per_row, 1)) // _BF16_SUBLANE * _BF16_SUBLANE
    tb = max(_BF16_SUBLANE, min(tb, 512))   # M = T*TB already saturates the MXU well before 512
    b16 = _round_up(B, _BF16_SUBLANE)
    tb = min(tb, b16)
    if b16 >= 2 * _BF16_SUBLANE:            # >= 2 grid steps -> both v7x TensorCores busy
        tb = min(tb, _round_up((b16 + 1) // 2, _BF16_SUBLANE))
    return tb


def _const_spec(shape):
    """BlockSpec for an operand whose block is constant across the grid; single-buffer it
    when this Pallas version supports pipeline_mode (frees a redundant VMEM copy)."""
    index_map = lambda b: (0,) * len(shape)
    try:
        return pl.BlockSpec(shape, index_map, pipeline_mode=pl.Buffered(1))
    except (TypeError, AttributeError):
        return pl.BlockSpec(shape, index_map)


def _make_kernel(ks, L, Ep, Hpad):
    kmax = max(ks)

    def kernel(x_ref, w_ref, b_ref, o_ref):
        # x_ref: (Lp, TB, Ep) bf16 time-major; w_ref: (kmax*Ep, 3*Hpad) bf16 fused weights;
        # b_ref: (1, 3*Hpad) f32; o_ref: (TB, 3*Hpad) f32.
        Lp, TB, _ = x_ref.shape
        T = Lp - kmax + 1                                   # == L - min(ks) + 1

        # im2col: concatenate the kmax shifted views along lanes -> (T, TB, kmax*Ep) bf16.
        # Slices are read straight from the VMEM block (no extra full-block copy kept live).
        lhs = jnp.concatenate([x_ref[j:j + T] for j in range(kmax)], axis=-1)

        for i, k in enumerate(ks):
            Ti = L - k + 1                                  # valid time positions for width k
            # One deep-K MXU matmul per width: (Ti*TB, k*Ep) @ (k*Ep, Hpad), f32 accumulate.
            g = jnp.dot(lhs[:Ti, :, :k * Ep].reshape(Ti * TB, k * Ep),
                        w_ref[:k * Ep, i * Hpad:(i + 1) * Hpad],
                        preferred_element_type=jnp.float32)
            m = jnp.max(g.reshape(Ti, TB, Hpad), axis=0)    # max over time (static valid rows)
            o_ref[:, i * Hpad:(i + 1) * Hpad] = jnp.maximum(
                m + b_ref[:, i * Hpad:(i + 1) * Hpad], 0.0)  # bias + ReLU after the max

    return kernel


def conv_sent_encoder(ids, emb_table, conv_ws, conv_bs, *, compute_dtype=jnp.bfloat16):
    """ids: (B, L) int32; emb_table: (V, E) f32; conv_ws[i]: (k_i, E, H); conv_bs[i]: (1, H).
    Returns (B, 3*H) f32, matching the torch forward in eval mode."""
    B, L = ids.shape
    E = emb_table.shape[1]
    H = conv_bs[0].shape[-1]
    ks = tuple(int(w.shape[0]) for w in conv_ws)
    kmin, kmax = min(ks), max(ks)
    assert L >= kmax, f"sentence length {L} shorter than largest conv width {kmax}"

    Ep = _round_up(E, _LANE)              # lane-aligned embedding dim
    Hpad = _round_up(H, _LANE)            # lane-aligned per-width output group
    NPad = len(ks) * Hpad
    Lp = L + (kmax - kmin)                # extra time rows so all widths share the same slab
    T = Lp - kmax + 1                     # == L - kmin + 1

    itemsize = jnp.dtype(compute_dtype).itemsize
    budget, vmem_limit = _vmem_budget_and_limit()
    TB = _choose_batch_tile(B, Lp, T, Ep, Hpad, NPad, kmax, itemsize, budget)
    B_pad = _round_up(B, TB)
    grid = (B_pad // TB,)

    # ---- fused im2col weight (kmax*Ep, 3*Hpad): group i uses rows [j*Ep, j*Ep+E) for j<k_i ----
    w_fused = jnp.zeros((kmax * Ep, NPad), compute_dtype)
    b_fused = jnp.zeros((1, NPad), jnp.float32)
    for i, (w, b) in enumerate(zip(conv_ws, conv_bs)):
        k = int(w.shape[0])
        wc = w.astype(compute_dtype)
        for j in range(k):
            w_fused = w_fused.at[j * Ep:j * Ep + E, i * Hpad:i * Hpad + H].set(wc[j])
        b_fused = b_fused.at[:, i * Hpad:i * Hpad + H].set(b.reshape(1, H).astype(jnp.float32))

    # ---- ONE bf16 gather producing the kernel layout directly: (Lp, B_pad, Ep) ----
    # Padded ids use 0; padded time/batch positions never reach a kept output (static row
    # slicing in the kernel + final batch slice), so the value of embedding row 0 is
    # irrelevant for the padding trick.  Dropout is identity (eval mode, training=False).
    # TODO(synk): fuse this gather into the kernel (scalar-prefetched ids + DMA gather from an
    # HBM-resident table) so (Lp, B_pad, Ep) is never materialized in HBM.
    emb_bf = emb_table.astype(compute_dtype)
    if Ep != E:
        emb_bf = jnp.pad(emb_bf, ((0, 0), (0, Ep - E)))
    ids_pad = jnp.zeros((Lp, B_pad), ids.dtype).at[:L, :B].set(ids.T)
    x = jnp.take(emb_bf, ids_pad, axis=0)                           # (Lp, B_pad, Ep) bf16

    out = pl.pallas_call(
        _make_kernel(ks, L, Ep, Hpad),
        out_shape=jax.ShapeDtypeStruct((B_pad, NPad), jnp.float32),
        grid=grid,
        in_specs=[
            pl.BlockSpec((Lp, TB, Ep), lambda b: (0, b, 0)),        # batch tile, auto-pipelined
            _const_spec((kmax * Ep, NPad)),                         # fused weights (resident)
            _const_spec((1, NPad)),                                 # fused bias (resident)
        ],
        out_specs=pl.BlockSpec((TB, NPad), lambda b: (b, 0)),       # lane-dense output stores
        compiler_params=pltpu.CompilerParams(
            dimension_semantics=("parallel",),                      # megacore split on v7x
            vmem_limit_bytes=vmem_limit,
        ),
    )(x, w_fused, b_fused)

    # Drop batch padding and per-group lane padding, restoring the torch column order.
    return jnp.concatenate([out[:B, i * Hpad:i * Hpad + H] for i in range(len(ks))], axis=1)


def _reference(ids, emb_table, conv_ws, conv_bs):
    """Pure-JAX f32 reference mirroring the torch forward (eval mode)."""
    emb = jnp.take(emb_table, ids, axis=0)                          # (B, L, E)
    outs = []
    for w, b in zip(conv_ws, conv_bs):
        k = w.shape[0]
        T = emb.shape[1] - k + 1
        acc = sum(jnp.einsum('bte,eh->bth', emb[:, j:j + T, :], w[j]) for j in range(k))
        acc = acc + b.reshape(1, 1, -1)
        outs.append(jnp.max(jax.nn.relu(acc), axis=1))
    return jnp.concatenate(outs, axis=1)


if __name__ == "__main__":
    # Small shapes consistent with the module.
    vocab_size, emb_dim, n_hidden = 100, 32, 32
    batch, seq = 2, 16

    key = jax.random.PRNGKey(0)
    k_emb, k_ids, *k_ws = jax.random.split(key, 2 + len(KERNEL_SIZES))

    # Deterministic parameter init (synthetic, not a checkpoint load).
    emb_table = 0.1 * jax.random.normal(k_emb, (vocab_size, emb_dim), jnp.float32)
    emb_table = emb_table.at[0].set(0.0)          # padding_idx=0 (zero row, as nn.Embedding init)

    conv_ws, conv_bs = [], []
    for i, k in enumerate(KERNEL_SIZES):
        kw, kb = jax.random.split(k_ws[i], 2)
        conv_ws.append(0.1 * jax.random.normal(kw, (k, emb_dim, n_hidden), jnp.float32))
        conv_bs.append(0.1 * jax.random.normal(kb, (1, n_hidden), jnp.float32))

    ids = jax.random.randint(k_ids, (batch, seq), 0, vocab_size, dtype=jnp.int32)

    out = jax.block_until_ready(conv_sent_encoder(ids, emb_table, conv_ws, conv_bs))
    ref = jax.block_until_ready(_reference(ids, emb_table, conv_ws, conv_bs))

    assert out.shape == (batch, 3 * n_hidden), out.shape
    # bf16 inputs + f32 accumulation vs. f32 reference -> modest tolerance.
    np.testing.assert_allclose(np.asarray(out), np.asarray(ref), rtol=1e-2, atol=1e-2)
    print("KERNEL_OK")
</pallas_src>

<mosaic_0001>
module attributes {stable_mosaic.version = 11 : i64} {
  func.func @kernel(%arg0: i32, %arg1: memref<18x16x128xbf16, #tpu.memory_space<vmem>>, %arg2: memref<640x384xbf16, #tpu.memory_space<vmem>>, %arg3: memref<1x384xf32, #tpu.memory_space<vmem>>, %arg4: memref<16x384xf32, #tpu.memory_space<vmem>>) attributes {dimension_semantics = [#tpu.dimension_semantics<parallel>], iteration_bounds = array<i64: 1>, scalar_prefetch = 0 : i64, scratch_operands = 0 : i64, tpu.core_type = #tpu.core_type<tc>, window_params = [{transform_indices = @transform_0, window_bounds = array<i64: 18, 16, 128>}, {pipeline_mode = #tpu.pipeline_mode<synchronous>, transform_indices = @transform_1, window_bounds = array<i64: 640, 384>}, {pipeline_mode = #tpu.pipeline_mode<synchronous>, transform_indices = @transform_2, window_bounds = array<i64: 1, 384>}, {transform_indices = @transform_3, window_bounds = array<i64: 16, 384>}]} {
    %c0 = arith.constant 0 : index
    %c0_0 = arith.constant 0 : index
    %c0_1 = arith.constant 0 : index
    %0 = vector.load %arg1[%c0, %c0_0, %c0_1] : memref<18x16x128xbf16, #tpu.memory_space<vmem>>, vector<14x16x128xbf16>
    %c1 = arith.constant 1 : index
    %c0_2 = arith.constant 0 : index
    %c0_3 = arith.constant 0 : index
    %1 = vector.load %arg1[%c1, %c0_2, %c0_3] : memref<18x16x128xbf16, #tpu.memory_space<vmem>>, vector<14x16x128xbf16>
    %c2 = arith.constant 2 : index
    %c0_4 = arith.constant 0 : index
    %c0_5 = arith.constant 0 : index
    %2 = vector.load %arg1[%c2, %c0_4, %c0_5] : memref<18x16x128xbf16, #tpu.memory_space<vmem>>, vector<14x16x128xbf16>
    %c3 = arith.constant 3 : index
    %c0_6 = arith.constant 0 : index
    %c0_7 = arith.constant 0 : index
    %3 = vector.load %arg1[%c3, %c0_6, %c0_7] : memref<18x16x128xbf16, #tpu.memory_space<vmem>>, vector<14x16x128xbf16>
    %c4 = arith.constant 4 : index
    %c0_8 = arith.constant 0 : index
    %c0_9 = arith.constant 0 : index
    %4 = vector.load %arg1[%c4, %c0_8, %c0_9] : memref<18x16x128xbf16, #tpu.memory_space<vmem>>, vector<14x16x128xbf16>
    %5 = tpu.concatenate %0, %1, %2, %3, %4 in 2 : vector<14x16x128xbf16>, vector<14x16x128xbf16>, vector<14x16x128xbf16>, vector<14x16x128xbf16>, vector<14x16x128xbf16> -> vector<14x16x640xbf16>
    %6 = vector.extract_strided_slice %5 {offsets = [0, 0, 0], sizes = [14, 16, 384], strides = [1, 1, 1]} : vector<14x16x640xbf16> to vector<14x16x384xbf16>
    %7 = vector.shape_cast %6 : vector<14x16x384xbf16> to vector<224x384xbf16>
    %c0_10 = arith.constant 0 : index
    %c0_11 = arith.constant 0 : index
    %8 = vector.load %arg2[%c0_10, %c0_11] : memref<640x384xbf16, #tpu.memory_space<vmem>>, vector<384x128xbf16>
    %cst = arith.constant dense<0.000000e+00> : vector<224x128xf32>
    %9 = tpu.matmul %7, %8, %cst {dimension_numbers = #tpu.dot_dimension_numbers<[1], [0], [0], [1], [0, 0, 1, 1], [], []>} : vector<224x384xbf16>, vector<384x128xbf16>, vector<224x128xf32> -> vector<224x128xf32>
    %10 = vector.shape_cast %9 : vector<224x128xf32> to vector<14x16x128xf32>
    %cst_12 = arith.constant dense<0xFF800000> : vector<16x128xf32>
    %11 = vector.multi_reduction <maximumf>, %10, %cst_12 [0] : vector<14x16x128xf32> to vector<16x128xf32>
    %c0_13 = arith.constant 0 : index
    %c0_14 = arith.constant 0 : index
    %12 = vector.load %arg3[%c0_13, %c0_14] : memref<1x384xf32, #tpu.memory_space<vmem>>, vector<1x128xf32>
    %13 = vector.broadcast %12 : vector<1x128xf32> to vector<16x128xf32>
    %14 = arith.addf %11, %13 : vector<16x128xf32>
    %cst_15 = arith.constant 0.000000e+00 : f32
    %15 = vector.broadcast %cst_15 : f32 to vector<16x128xf32>
    %16 = arith.maximumf %14, %15 : vector<16x128xf32>
    %c0_16 = arith.constant 0 : index
    %c0_17 = arith.constant 0 : index
    %17 = vector.load %arg4[%c0_16, %c0_17] : memref<16x384xf32, #tpu.memory_space<vmem>>, vector<16x128xf32>
    tpu.vector_store %arg4[%c0_16, %c0_17], %16 {strides = array<i32>} : memref<16x384xf32, #tpu.memory_space<vmem>>, vector<16x128xf32>,
    %18 = vector.extract_strided_slice %5 {offsets = [0, 0, 0], sizes = [13, 16, 512], strides = [1, 1, 1]} : vector<14x16x640xbf16> to vector<13x16x512xbf16>
    %19 = vector.shape_cast %18 : vector<13x16x512xbf16> to vector<208x512xbf16>
    %c0_18 = arith.constant 0 : index
    %c128 = arith.constant 128 : index
    %20 = vector.load %arg2[%c0_18, %c128] : memref<640x384xbf16, #tpu.memory_space<vmem>>, vector<512x128xbf16>
    %cst_19 = arith.constant dense<0.000000e+00> : vector<208x128xf32>
    %21 = tpu.matmul %19, %20, %cst_19 {dimension_numbers = #tpu.dot_dimension_numbers<[1], [0], [0], [1], [0, 0, 1, 1], [], []>} : vector<208x512xbf16>, vector<512x128xbf16>, vector<208x128xf32> -> vector<208x128xf32>
    %22 = vector.shape_cast %21 : vector<208x128xf32> to vector<13x16x128xf32>
    %cst_20 = arith.constant dense<0xFF800000> : vector<16x128xf32>
    %23 = vector.multi_reduction <maximumf>, %22, %cst_20 [0] : vector<13x16x128xf32> to vector<16x128xf32>
    %c0_21 = arith.constant 0 : index
    %c128_22 = arith.constant 128 : index
    %24 = vector.load %arg3[%c0_21, %c128_22] : memref<1x384xf32, #tpu.memory_space<vmem>>, vector<1x128xf32>
    %25 = vector.broadcast %24 : vector<1x128xf32> to vector<16x128xf32>
    %26 = arith.addf %23, %25 : vector<16x128xf32>
    %cst_23 = arith.constant 0.000000e+00 : f32
    %27 = vector.broadcast %cst_23 : f32 to vector<16x128xf32>
    %28 = arith.maximumf %26, %27 : vector<16x128xf32>
    %c0_24 = arith.constant 0 : index
    %c128_25 = arith.constant 128 : index
    %29 = vector.load %arg4[%c0_24, %c128_25] : memref<16x384xf32, #tpu.memory_space<vmem>>, vector<16x128xf32>
    tpu.vector_store %arg4[%c0_24, %c128_25], %28 {strides = array<i32>} : memref<16x384xf32, #tpu.memory_space<vmem>>, vector<16x128xf32>,
    %30 = vector.extract_strided_slice %5 {offsets = [0, 0, 0], sizes = [12, 16, 640], strides = [1, 1, 1]} : vector<14x16x640xbf16> to vector<12x16x640xbf16>
    %31 = vector.shape_cast %30 : vector<12x16x640xbf16> to vector<192x640xbf16>
    %c0_26 = arith.constant 0 : index
    %c256 = arith.constant 256 : index
    %32 = vector.load %arg2[%c0_26, %c256] : memref<640x384xbf16, #tpu.memory_space<vmem>>, vector<640x128xbf16>
    %cst_27 = arith.constant dense<0.000000e+00> : vector<192x128xf32>
    %33 = tpu.matmul %31, %32, %cst_27 {dimension_numbers = #tpu.dot_dimension_numbers<[1], [0], [0], [1], [0, 0, 1, 1], [], []>} : vector<192x640xbf16>, vector<640x128xbf16>, vector<192x128xf32> -> vector<192x128xf32>
    %34 = vector.shape_cast %33 : vector<192x128xf32> to vector<12x16x128xf32>
    %cst_28 = arith.constant dense<0xFF800000> : vector<16x128xf32>
    %35 = vector.multi_reduction <maximumf>, %34, %cst_28 [0] : vector<12x16x128xf32> to vector<16x128xf32>
    %c0_29 = arith.constant 0 : index
    %c256_30 = arith.constant 256 : index
    %36 = vector.load %arg3[%c0_29, %c256_30] : memref<1x384xf32, #tpu.memory_space<vmem>>, vector<1x128xf32>
    %37 = vector.broadcast %36 : vector<1x128xf32> to vector<16x128xf32>
    %38 = arith.addf %35, %37 : vector<16x128xf32>
    %cst_31 = arith.constant 0.000000e+00 : f32
    %39 = vector.broadcast %cst_31 : f32 to vector<16x128xf32>
    %40 = arith.maximumf %38, %39 : vector<16x128xf32>
    %c0_32 = arith.constant 0 : index
    %c256_33 = arith.constant 256 : index
    %41 = vector.load %arg4[%c0_32, %c256_33] : memref<16x384xf32, #tpu.memory_space<vmem>>, vector<16x128xf32>
    tpu.vector_store %arg4[%c0_32, %c256_33], %40 {strides = array<i32>} : memref<16x384xf32, #tpu.memory_space<vmem>>, vector<16x128xf32>,
    return
  }
  func.func @transform_0(%arg0: i32) -> (i32, i32, i32) {
    %c0_i32 = arith.constant 0 : i32
    %c0_i32_0 = arith.constant 0 : i32
    %c0_i32_1 = arith.constant 0 : i32
    return %c0_i32, %arg0, %c0_i32_0 : i32, i32, i32
  }
  func.func @transform_1(%arg0: i32) -> (i32, i32) {
    %c0_i32 = arith.constant 0 : i32
    %c0_i32_0 = arith.constant 0 : i32
    %c0_i32_1 = arith.constant 0 : i32
    return %c0_i32, %c0_i32_0 : i32, i32
  }
  func.func @transform_2(%arg0: i32) -> (i32, i32) {
    %c0_i32 = arith.constant 0 : i32
    %c0_i32_0 = arith.constant 0 : i32
    %c0_i32_1 = arith.constant 0 : i32
    return %c0_i32, %c0_i32_0 : i32, i32
  }
  func.func @transform_3(%arg0: i32) -> (i32, i32) {
    %c0_i32 = arith.constant 0 : i32
    %c0_i32_0 = arith.constant 0 : i32
    return %arg0, %c0_i32 : i32, i32
  }
}

</mosaic_0001>

<llo_original>
// kernel: tpu_custom_call.1
$region0: #{tpu_custom_call.1}
  #allocation0 [shape = 'u32[]', space=smem, size = 0x4, offset = 0x4, fixed_abs, tag = 'smem constant byte address 0x4 - core index']
  #allocation1 [shape = 'u32[144,128]{1,0:T(1,128)}', space=vmem, size = 0x12000, scoped, tag = 'internal scratch']
  %s0 = inlined_call_operand.hbm [shape: bf16[18,16,128], index: 0, kind: input, shape index: {}]
  %s1 = inlined_call_operand.hbm [shape: bf16[640,384], index: 1, kind: input, shape index: {}]
  %s2 = inlined_call_operand.vmem [shape: f32[1,384], index: 2, kind: input, shape index: {}]
  %s3 = inlined_call_operand.hbm [shape: f32[16,384], index: 3, kind: output, shape index: {}]
  %s4 = sld [smem:[#allocation0]]
  $region30: #{tpu_custom_call.1} parent=0
    _
  %s6 = ssub.s32 1, %s4
  %s7 = scalar_select 0, %s6, %s4
  $region1: #{tpu_custom_call.1} parent=0
    #allocation2 [shape = 'u8[73728]{0}', space=vmem, size = 0x12000, scoped, tag = 'input window, operand 0, single buffered']
    #allocation3 [shape = 's32[1]{0}', space=sflag, size = 0x4, scoped, tag = 'scoped memory for tpu_custom_call.1']
    #allocation4 [shape = 's32[1]{0}', space=sflag, size = 0x4, scoped, tag = 'scoped memory for tpu_custom_call.1']
    #allocation5 [shape = 'u8[491520]{0}', space=vmem, size = 0x78000, scoped, tag = 'input window, operand 1, single buffered']
    #allocation6 [shape = 's32[1]{0}', space=sflag, size = 0x4, scoped, tag = 'scoped memory for tpu_custom_call.1']
    #allocation7 [shape = 'u8[24576]{0}', space=vmem, size = 0x6000, scoped, tag = 'output window, operand 0, single buffered']
    %8 = vsyncpa [#allocation3], 0
    %9 = vsyncpa [#allocation6], 0
    %10 = vsyncpa [#allocation4], 0
    // Predicated region
    $region2: #{tpu_custom_call.1} parent=1 // pred_check
      _
    $region3: #{tpu_custom_call.1} parent=1 // pred_check_branch
      %12 = sbr.rel (0) target = $region5
    $region4: #{tpu_custom_call.1} parent=1 // pred_region
      %s14 = ssub.s32 2304, 2304
      %15 = vsyncadd [#allocation3], %s14
      %s16 = sshll.u32 [#allocation2], 4
      %s17 = int_to_ptr.vmem [resolvable:$true] %s16
      %22 = dma.hbm_to_vmem [thread:$0]  %s0, 2304, %s17, [#allocation3], 64, 64, 4
    $region5: #{tpu_custom_call.1} parent=1 // pred_fallthru
      _
    // Predicated region
    $region6: #{tpu_custom_call.1} parent=1 // pred_check
      _
    $region7: #{tpu_custom_call.1} parent=1 // pred_check_branch
      %24 = sbr.rel (0) target = $region9
    $region8: #{tpu_custom_call.1} parent=1 // pred_region
      %s26 = ssub.s32 15360, 15360
      %27 = vsyncadd [#allocation6], %s26
      %s28 = sshll.u32 [#allocation5], 4
      %s29 = int_to_ptr.vmem [resolvable:$true] %s28
      %34 = dma.hbm_to_vmem [thread:$0]  %s1, 15360, %s29, [#allocation6], 192, 192, 12
    $region9: #{tpu_custom_call.1} parent=1 // pred_fallthru
      _
    // Predicated region
    $region10: #{tpu_custom_call.1} parent=1 // pred_check
      _
    $region11: #{tpu_custom_call.1} parent=1 // pred_check_branch
      %36 = sbr.rel (0) target = $region13
    $region12: #{tpu_custom_call.1} parent=1 // pred_region
      _
    $region13: #{tpu_custom_call.1} parent=1 // pred_fallthru
      _
    // Predicated region
    $region14: #{tpu_custom_call.1} parent=1 // pred_check
      _
    $region15: #{tpu_custom_call.1} parent=1 // pred_check_branch
      %38 = sbr.rel (0) target = $region17
    $region16: #{tpu_custom_call.1} parent=1 // pred_region
      %39 = dma.done [#allocation3], 2304
    $region17: #{tpu_custom_call.1} parent=1 // pred_fallthru
      _
    // Predicated region
    $region18: #{tpu_custom_call.1} parent=1 // pred_check
      _
    $region19: #{tpu_custom_call.1} parent=1 // pred_check_branch
      %41 = sbr.rel (0) target = $region21
    $region20: #{tpu_custom_call.1} parent=1 // pred_region
      %42 = dma.done [#allocation6], 15360
    $region21: #{tpu_custom_call.1} parent=1 // pred_fallthru
      _
    %v44 = vld [vmem:[#allocation2] sm:$0xf]
    %v45 = vld [vmem:[#allocation2 + $0x4] sm:$0xf]
    %v46 = vld [vmem:[#allocation2 + $0x8] sm:$0xf]
    %v47 = vld [vmem:[#allocation2 + $0xc] sm:$0xf]
    %v48 = vld [vmem:[#allocation2 + $0x10] sm:$0xf]
    %v49 = vld [vmem:[#allocation2 + $0x14] sm:$0xf]
    %v50 = vld [vmem:[#allocation2 + $0x18] sm:$0xf]
    %v51 = vld [vmem:[#allocation2 + $0x1c] sm:$0xf]
    %v52 = vld [vmem:[#allocation2 + $0x20] sm:$0xf]
    %v53 = vld [vmem:[#allocation2 + $0x24] sm:$0xf]
    %v54 = vld [vmem:[#allocation2 + $0x28] sm:$0xf]
    %v55 = vld [vmem:[#allocation2 + $0x2c] sm:$0xf]
    %v56 = vld [vmem:[#allocation2 + $0x30] sm:$0xf]
    %v57 = vld [vmem:[#allocation2 + $0x34] sm:$0xf]
    %v58 = vld [vmem:[#allocation2 + $0x38] sm:$0xf]
    %v59 = vld [vmem:[#allocation2 + $0x3c] sm:$0xf]
    %v60 = vld [vmem:[#allocation2 + $0x40] sm:$0xf]
    %v61 = vld [vmem:[#allocation2 + $0x44] sm:$0xf]
    %v62 = vld [vmem:[#allocation2 + $0x48] sm:$0xf]
    %v63 = vld [vmem:[#allocation2 + $0x4c] sm:$0xf]
    %v64 = vld [vmem:[#allocation2 + $0x50] sm:$0xf]
    %v65 = vld [vmem:[#allocation2 + $0x54] sm:$0xf]
    %v66 = vld [vmem:[#allocation2 + $0x58] sm:$0xf]
    %v67 = vld [vmem:[#allocation2 + $0x5c] sm:$0xf]
    %v68 = vld [vmem:[#allocation2 + $0x60] sm:$0xf]
    %v69 = vld [vmem:[#allocation2 + $0x64] sm:$0xf]
    %v70 = vld [vmem:[#allocation2 + $0x68] sm:$0xf]
    %v71 = vld [vmem:[#allocation2 + $0x6c] sm:$0xf]
    %s72 = scalar_lea.vmem [#allocation2], 8
    %v73 = vld [vmem:[%s72] sm:$0xf]
    %v74 = vld [vmem:[%s72 + $0x4] sm:$0xf]
    %v75 = vld [vmem:[%s72 + $0x8] sm:$0xf]
    %v76 = vld [vmem:[%s72 + $0xc] sm:$0xf]
    %v77 = vld [vmem:[%s72 + $0x10] sm:$0xf]
    %v78 = vld [vmem:[%s72 + $0x14] sm:$0xf]
    %v79 = vld [vmem:[%s72 + $0x18] sm:$0xf]
    %v80 = vld [vmem:[%s72 + $0x1c] sm:$0xf]
    %v81 = vld [vmem:[%s72 + $0x20] sm:$0xf]
    %v82 = vld [vmem:[%s72 + $0x24] sm:$0xf]
    %v83 = vld [vmem:[%s72 + $0x28] sm:$0xf]
    %v84 = vld [vmem:[%s72 + $0x2c] sm:$0xf]
    %v85 = vld [vmem:[%s72 + $0x30] sm:$0xf]
    %v86 = vld [vmem:[%s72 + $0x34] sm:$0xf]
    %v87 = vld [vmem:[%s72 + $0x38] sm:$0xf]
    %v88 = vld [vmem:[%s72 + $0x3c] sm:$0xf]
    %v89 = vld [vmem:[%s72 + $0x40] sm:$0xf]
    %v90 = vld [vmem:[%s72 + $0x44] sm:$0xf]
    %v91 = vld [vmem:[%s72 + $0x48] sm:$0xf]
    %v92 = vld [vmem:[%s72 + $0x4c] sm:$0xf]
    %v93 = vld [vmem:[%s72 + $0x50] sm:$0xf]
    %v94 = vld [vmem:[%s72 + $0x54] sm:$0xf]
    %v95 = vld [vmem:[%s72 + $0x58] sm:$0xf]
    %v96 = vld [vmem:[%s72 + $0x5c] sm:$0xf]
    %v97 = vld [vmem:[%s72 + $0x60] sm:$0xf]
    %v98 = vld [vmem:[%s72 + $0x64] sm:$0xf]
    %v99 = vld [vmem:[%s72 + $0x68] sm:$0xf]
    %v100 = vld [vmem:[%s72 + $0x6c] sm:$0xf]
    %s101 = scalar_lea.vmem [#allocation2], 16
    %v102 = vld [vmem:[%s101] sm:$0xf]
    %v103 = vld [vmem:[%s101 + $0x4] sm:$0xf]
    %v104 = vld [vmem:[%s101 + $0x8] sm:$0xf]
    %v105 = vld [vmem:[%s101 + $0xc] sm:$0xf]
    %v106 = vld [vmem:[%s101 + $0x10] sm:$0xf]
    %v107 = vld [vmem:[%s101 + $0x14] sm:$0xf]
    %v108 = vld [vmem:[%s101 + $0x18] sm:$0xf]
    %v109 = vld [vmem:[%s101 + $0x1c] sm:$0xf]
    %v110 = vld [vmem:[%s101 + $0x20] sm:$0xf]
    %v111 = vld [vmem:[%s101 + $0x24] sm:$0xf]
    %v112 = vld [vmem:[%s101 + $0x28] sm:$0xf]
    %v113 = vld [vmem:[%s101 + $0x2c] sm:$0xf]
    %v114 = vld [vmem:[%s101 + $0x30] sm:$0xf]
    %v115 = vld [vmem:[%s101 + $0x34] sm:$0xf]
    %v116 = vld [vmem:[%s101 + $0x38] sm:$0xf]
    %v117 = vld [vmem:[%s101 + $0x3c] sm:$0xf]
    %v118 = vld [vmem:[%s101 + $0x40] sm:$0xf]
    %v119 = vld [vmem:[%s101 + $0x44] sm:$0xf]
    %v120 = vld [vmem:[%s101 + $0x48] sm:$0xf]
    %v121 = vld [vmem:[%s101 + $0x4c] sm:$0xf]
    %v122 = vld [vmem:[%s101 + $0x50] sm:$0xf]
    %v123 = vld [vmem:[%s101 + $0x54] sm:$0xf]
    %v124 = vld [vmem:[%s101 + $0x58] sm:$0xf]
    %v125 = vld [vmem:[%s101 + $0x5c] sm:$0xf]
    %v126 = vld [vmem:[%s101 + $0x60] sm:$0xf]
    %v127 = vld [vmem:[%s101 + $0x64] sm:$0xf]
    %v128 = vld [vmem:[%s101 + $0x68] sm:$0xf]
    %v129 = vld [vmem:[%s101 + $0x6c] sm:$0xf]
    %s130 = scalar_lea.vmem [#allocation2], 24
    %v131 = vld [vmem:[%s130] sm:$0xf]
    %v132 = vld [vmem:[%s130 + $0x4] sm:$0xf]
    %v133 = vld [vmem:[%s130 + $0x8] sm:$0xf]
    %v134 = vld [vmem:[%s130 + $0xc] sm:$0xf]
    %v135 = vld [vmem:[%s130 + $0x10] sm:$0xf]
    %v136 = vld [vmem:[%s130 + $0x14] sm:$0xf]
    %v137 = vld [vmem:[%s130 + $0x18] sm:$0xf]
    %v138 = vld [vmem:[%s130 + $0x1c] sm:$0xf]
    %v139 = vld [vmem:[%s130 + $0x20] sm:$0xf]
    %v140 = vld [vmem:[%s130 + $0x24] sm:$0xf]
    %v141 = vld [vmem:[%s130 + $0x28] sm:$0xf]
    %v142 = vld [vmem:[%s130 + $0x2c] sm:$0xf]
    %v143 = vld [vmem:[%s130 + $0x30] sm:$0xf]
    %v144 = vld [vmem:[%s130 + $0x34] sm:$0xf]
    %v145 = vld [vmem:[%s130 + $0x38] sm:$0xf]
    %v146 = vld [vmem:[%s130 + $0x3c] sm:$0xf]
    %v147 = vld [vmem:[%s130 + $0x40] sm:$0xf]
    %v148 = vld [vmem:[%s130 + $0x44] sm:$0xf]
    %v149 = vld [vmem:[%s130 + $0x48] sm:$0xf]
    %v150 = vld [vmem:[%s130 + $0x4c] sm:$0xf]
    %v151 = vld [vmem:[%s130 + $0x50] sm:$0xf]
    %v152 = vld [vmem:[%s130 + $0x54] sm:$0xf]
    %v153 = vld [vmem:[%s130 + $0x58] sm:$0xf]
    %v154 = vld [vmem:[%s130 + $0x5c] sm:$0xf]
    %v155 = vld [vmem:[%s130 + $0x60] sm:$0xf]
    %v156 = vld [vmem:[%s130 + $0x64] sm:$0xf]
    %s157 = scalar_lea.vmem [#allocation2], 32
    %v158 = vld [vmem:[%s157] sm:$0xf]
    %v159 = vld [vmem:[%s157 + $0x4] sm:$0xf]
    %v160 = vld [vmem:[%s157 + $0x8] sm:$0xf]
    %v161 = vld [vmem:[%s157 + $0xc] sm:$0xf]
    %v162 = vld [vmem:[%s157 + $0x10] sm:$0xf]
    %v163 = vld [vmem:[%s157 + $0x14] sm:$0xf]
    %v164 = vld [vmem:[%s157 + $0x18] sm:$0xf]
    %v165 = vld [vmem:[%s157 + $0x1c] sm:$0xf]
    %v166 = vld [vmem:[%s157 + $0x20] sm:$0xf]
    %v167 = vld [vmem:[%s157 + $0x24] sm:$0xf]
    %v168 = vld [vmem:[%s157 + $0x28] sm:$0xf]
    %v169 = vld [vmem:[%s157 + $0x2c] sm:$0xf]
    %v170 = vld [vmem:[%s157 + $0x30] sm:$0xf]
    %v171 = vld [vmem:[%s157 + $0x34] sm:$0xf]
    %v172 = vld [vmem:[%s157 + $0x38] sm:$0xf]
    %v173 = vld [vmem:[%s157 + $0x3c] sm:$0xf]
    %v174 = vld [vmem:[%s157 + $0x40] sm:$0xf]
    %v175 = vld [vmem:[%s157 + $0x44] sm:$0xf]
    %v176 = vld [vmem:[%s157 + $0x48] sm:$0xf]
    %v177 = vld [vmem:[%s157 + $0x4c] sm:$0xf]
    %v178 = vld [vmem:[%s157 + $0x50] sm:$0xf]
    %v179 = vld [vmem:[%s157 + $0x54] sm:$0xf]
    %v180 = vld [vmem:[%s157 + $0x58] sm:$0xf]
    %v181 = vld [vmem:[%s157 + $0x5c] sm:$0xf]
    %v210 = vunpack.c.l.b16 %v44
    %v211 = vunpack.c.l.b16 %v45
    %v212 = vunpack.c.l.b16 %v46
    %v213 = vunpack.c.l.b16 %v47
    %v214 = vunpack.c.l.b16 %v48
    %v215 = vunpack.c.l.b16 %v49
    %v216 = vunpack.c.l.b16 %v50
    %v217 = vunpack.c.l.b16 %v51
    %v218 = vunpack.c.l.b16 %v52
    %v219 = vunpack.c.l.b16 %v53
    %v220 = vunpack.c.l.b16 %v54
    %v221 = vunpack.c.l.b16 %v55
    %v222 = vunpack.c.l.b16 %v56
    %v223 = vunpack.c.l.b16 %v57
    %v224 = vunpack.c.l.b16 %v58
    %v225 = vunpack.c.l.b16 %v59
    %v226 = vunpack.c.l.b16 %v60
    %v227 = vunpack.c.l.b16 %v61
    %v228 = vunpack.c.l.b16 %v62
    %v229 = vunpack.c.l.b16 %v63
    %v230 = vunpack.c.l.b16 %v64
    %v231 = vunpack.c.l.b16 %v65
    %v232 = vunpack.c.l.b16 %v66
    %v233 = vunpack.c.l.b16 %v67
    %v234 = vunpack.c.l.b16 %v68
    %v235 = vunpack.c.l.b16 %v69
    %v236 = vunpack.c.l.b16 %v70
    %v237 = vunpack.c.l.b16 %v71
    %v238 = vpack.c.b16 %v211, %v210
    %v239 = vpack.c.b16 %v213, %v212
    %v240 = vpack.c.b16 %v215, %v214
    %v241 = vpack.c.b16 %v217, %v216
    %v242 = vpack.c.b16 %v219, %v218
    %v243 = vpack.c.b16 %v221, %v220
    %v244 = vpack.c.b16 %v223, %v222
    %v245 = vpack.c.b16 %v225, %v224
    %v246 = vpack.c.b16 %v227, %v226
    %v247 = vpack.c.b16 %v229, %v228
    %v248 = vpack.c.b16 %v231, %v230
    %v249 = vpack.c.b16 %v233, %v232
    %v250 = vpack.c.b16 %v235, %v234
    %v251 = vpack.c.b16 %v237, %v236
    %v294 = vunpack.c.l.b16 %v73
    %v295 = vunpack.c.l.b16 %v74
    %v296 = vunpack.c.l.b16 %v75
    %v297 = vunpack.c.l.b16 %v76
    %v298 = vunpack.c.l.b16 %v77
    %v299 = vunpack.c.l.b16 %v78
    %v300 = vunpack.c.l.b16 %v79
    %v301 = vunpack.c.l.b16 %v80
    %v302 = vunpack.c.l.b16 %v81
    %v303 = vunpack.c.l.b16 %v82
    %v304 = vunpack.c.l.b16 %v83
    %v305 = vunpack.c.l.b16 %v84
    %v306 = vunpack.c.l.b16 %v85
    %v307 = vunpack.c.l.b16 %v86
    %v308 = vunpack.c.l.b16 %v87
    %v309 = vunpack.c.l.b16 %v88
    %v310 = vunpack.c.l.b16 %v89
    %v311 = vunpack.c.l.b16 %v90
    %v312 = vunpack.c.l.b16 %v91
    %v313 = vunpack.c.l.b16 %v92
    %v314 = vunpack.c.l.b16 %v93
    %v315 = vunpack.c.l.b16 %v94
    %v316 = vunpack.c.l.b16 %v95
    %v317 = vunpack.c.l.b16 %v96
    %v318 = vunpack.c.l.b16 %v97
    %v319 = vunpack.c.l.b16 %v98
    %v320 = vunpack.c.l.b16 %v99
    %v321 = vunpack.c.l.b16 %v100
    %v322 = vpack.c.b16 %v295, %v294
    %v323 = vpack.c.b16 %v297, %v296
    %v324 = vpack.c.b16 %v299, %v298
    %v325 = vpack.c.b16 %v301, %v300
    %v326 = vpack.c.b16 %v303, %v302
    %v327 = vpack.c.b16 %v305, %v304
    %v328 = vpack.c.b16 %v307, %v306
    %v329 = vpack.c.b16 %v309, %v308
    %v330 = vpack.c.b16 %v311, %v310
    %v331 = vpack.c.b16 %v313, %v312
    %v332 = vpack.c.b16 %v315, %v314
    %v333 = vpack.c.b16 %v317, %v316
    %v334 = vpack.c.b16 %v319, %v318
    %v335 = vpack.c.b16 %v321, %v320
    %v378 = vunpack.c.l.b16 %v102
    %v379 = vunpack.c.l.b16 %v103
    %v380 = vunpack.c.l.b16 %v104
    %v381 = vunpack.c.l.b16 %v105
    %v382 = vunpack.c.l.b16 %v106
    %v383 = vunpack.c.l.b16 %v107
    %v384 = vunpack.c.l.b16 %v108
    %v385 = vunpack.c.l.b16 %v109
    %v386 = vunpack.c.l.b16 %v110
    %v387 = vunpack.c.l.b16 %v111
    %v388 = vunpack.c.l.b16 %v112
    %v389 = vunpack.c.l.b16 %v113
    %v390 = vunpack.c.l.b16 %v114
    %v391 = vunpack.c.l.b16 %v115
    %v392 = vunpack.c.l.b16 %v116
    %v393 = vunpack.c.l.b16 %v117
    %v394 = vunpack.c.l.b16 %v118
    %v395 = vunpack.c.l.b16 %v119
    %v396 = vunpack.c.l.b16 %v120
    %v397 = vunpack.c.l.b16 %v121
    %v398 = vunpack.c.l.b16 %v122
    %v399 = vunpack.c.l.b16 %v123
    %v400 = vunpack.c.l.b16 %v124
    %v401 = vunpack.c.l.b16 %v125
    %v402 = vunpack.c.l.b16 %v126
    %v403 = vunpack.c.l.b16 %v127
    %v404 = vunpack.c.l.b16 %v128
    %v405 = vunpack.c.l.b16 %v129
    %v406 = vpack.c.b16 %v379, %v378
    %v407 = vpack.c.b16 %v381, %v380
    %v408 = vpack.c.b16 %v383, %v382
    %v409 = vpack.c.b16 %v385, %v384
    %v410 = vpack.c.b16 %v387, %v386
    %v411 = vpack.c.b16 %v389, %v388
    %v412 = vpack.c.b16 %v391, %v390
    %v413 = vpack.c.b16 %v393, %v392
    %v414 = vpack.c.b16 %v395, %v394
    %v415 = vpack.c.b16 %v397, %v396
    %v416 = vpack.c.b16 %v399, %v398
    %v417 = vpack.c.b16 %v401, %v400
    %v418 = vpack.c.b16 %v403, %v402
    %v419 = vpack.c.b16 %v405, %v404
    %v460 = vunpack.c.l.b16 %v131
    %v461 = vunpack.c.l.b16 %v132
    %v462 = vunpack.c.l.b16 %v133
    %v463 = vunpack.c.l.b16 %v134
    %v464 = vunpack.c.l.b16 %v135
    %v465 = vunpack.c.l.b16 %v136
    %v466 = vunpack.c.l.b16 %v137
    %v467 = vunpack.c.l.b16 %v138
    %v468 = vunpack.c.l.b16 %v139
    %v469 = vunpack.c.l.b16 %v140
    %v470 = vunpack.c.l.b16 %v141
    %v471 = vunpack.c.l.b16 %v142
    %v472 = vunpack.c.l.b16 %v143
    %v473 = vunpack.c.l.b16 %v144
    %v474 = vunpack.c.l.b16 %v145
    %v475 = vunpack.c.l.b16 %v146
    %v476 = vunpack.c.l.b16 %v147
    %v477 = vunpack.c.l.b16 %v148
    %v478 = vunpack.c.l.b16 %v149
    %v479 = vunpack.c.l.b16 %v150
    %v480 = vunpack.c.l.b16 %v151
    %v481 = vunpack.c.l.b16 %v152
    %v482 = vunpack.c.l.b16 %v153
    %v483 = vunpack.c.l.b16 %v154
    %v484 = vunpack.c.l.b16 %v155
    %v485 = vunpack.c.l.b16 %v156
    %v486 = vpack.c.b16 %v461, %v460
    %v487 = vpack.c.b16 %v463, %v462
    %v488 = vpack.c.b16 %v465, %v464
    %v489 = vpack.c.b16 %v467, %v466
    %v490 = vpack.c.b16 %v469, %v468
    %v491 = vpack.c.b16 %v471, %v470
    %v492 = vpack.c.b16 %v473, %v472
    %v493 = vpack.c.b16 %v475, %v474
    %v494 = vpack.c.b16 %v477, %v476
    %v495 = vpack.c.b16 %v479, %v478
    %v496 = vpack.c.b16 %v481, %v480
    %v497 = vpack.c.b16 %v483, %v482
    %v498 = vpack.c.b16 %v485, %v484
    %v536 = vunpack.c.l.b16 %v158
    %v537 = vunpack.c.l.b16 %v159
    %v538 = vunpack.c.l.b16 %v160
    %v539 = vunpack.c.l.b16 %v161
    %v540 = vunpack.c.l.b16 %v162
    %v541 = vunpack.c.l.b16 %v163
    %v542 = vunpack.c.l.b16 %v164
    %v543 = vunpack.c.l.b16 %v165
    %v544 = vunpack.c.l.b16 %v166
    %v545 = vunpack.c.l.b16 %v167
    %v546 = vunpack.c.l.b16 %v168
    %v547 = vunpack.c.l.b16 %v169
    %v548 = vunpack.c.l.b16 %v170
    %v549 = vunpack.c.l.b16 %v171
    %v550 = vunpack.c.l.b16 %v172
    %v551 = vunpack.c.l.b16 %v173
    %v552 = vunpack.c.l.b16 %v174
    %v553 = vunpack.c.l.b16 %v175
    %v554 = vunpack.c.l.b16 %v176
    %v555 = vunpack.c.l.b16 %v177
    %v556 = vunpack.c.l.b16 %v178
    %v557 = vunpack.c.l.b16 %v179
    %v558 = vunpack.c.l.b16 %v180
    %v559 = vunpack.c.l.b16 %v181
    %v560 = vpack.c.b16 %v537, %v536
    %v561 = vpack.c.b16 %v539, %v538
    %v562 = vpack.c.b16 %v541, %v540
    %v563 = vpack.c.b16 %v543, %v542
    %v564 = vpack.c.b16 %v545, %v544
    %v565 = vpack.c.b16 %v547, %v546
    %v566 = vpack.c.b16 %v549, %v548
    %v567 = vpack.c.b16 %v551, %v550
    %v568 = vpack.c.b16 %v553, %v552
    %v569 = vpack.c.b16 %v555, %v554
    %v570 = vpack.c.b16 %v557, %v556
    %v571 = vpack.c.b16 %v559, %v558
    %v584 = vld [vmem:[#allocation5] sm:$0xf]
    %v585 = vld [vmem:[#allocation5 + $0xc] sm:$0xf]
    %v586 = vld [vmem:[#allocation5 + $0x18] sm:$0xf]
    %v587 = vld [vmem:[#allocation5 + $0x24] sm:$0xf]
    %v588 = vld [vmem:[#allocation5 + $0x30] sm:$0xf]
    %v589 = vld [vmem:[#allocation5 + $0x3c] sm:$0xf]
    %v590 = vld [vmem:[#allocation5 + $0x48] sm:$0xf]
    %v591 = vld [vmem:[#allocation5 + $0x54] sm:$0xf]
    %v592 = vld [vmem:[#allocation5 + $0x60] sm:$0xf]
    %v593 = vld [vmem:[#allocation5 + $0x6c] sm:$0xf]
    %v594 = vld [vmem:[#allocation5 + $0x78] sm:$0xf]
    %v595 = vld [vmem:[#allocation5 + $0x84] sm:$0xf]
    %v596 = vld [vmem:[#allocation5 + $0x90] sm:$0xf]
    %v597 = vld [vmem:[#allocation5 + $0x9c] sm:$0xf]
    %v598 = vld [vmem:[#allocation5 + $0xa8] sm:$0xf]
    %v599 = vld [vmem:[#allocation5 + $0xb4] sm:$0xf]
    %v600 = vld [vmem:[#allocation5 + $0xc0] sm:$0xf]
    %v601 = vld [vmem:[#allocation5 + $0xcc] sm:$0xf]
    %v602 = vld [vmem:[#allocation5 + $0xd8] sm:$0xf]
    %v603 = vld [vmem:[#allocation5 + $0xe4] sm:$0xf]
    %v604 = vld [vmem:[#allocation5 + $0xf0] sm:$0xf]
    %v605 = vld [vmem:[#allocation5 + $0xfc] sm:$0xf]
    %v606 = vld [vmem:[#allocation5 + $0x108] sm:$0xf]
    %v607 = vld [vmem:[#allocation5 + $0x114] sm:$0xf]
    %v608 = vld [vmem:[#allocation5 + $0x120] sm:$0xf]
    %v609 = vld [vmem:[#allocation5 + $0x12c] sm:$0xf]
    %v610 = vld [vmem:[#allocation5 + $0x138] sm:$0xf]
    %v611 = vld [vmem:[#allocation5 + $0x144] sm:$0xf]
    %v612 = vld [vmem:[#allocation5 + $0x150] sm:$0xf]
    %v613 = vld [vmem:[#allocation5 + $0x15c] sm:$0xf]
    %v614 = vld [vmem:[#allocation5 + $0x168] sm:$0xf]
    %v615 = vld [vmem:[#allocation5 + $0x174] sm:$0xf]
    %v616 = vld [vmem:[#allocation5 + $0x180] sm:$0xf]
    %v617 = vld [vmem:[#allocation5 + $0x18c] sm:$0xf]
    %v618 = vld [vmem:[#allocation5 + $0x198] sm:$0xf]
    %v619 = vld [vmem:[#allocation5 + $0x1a4] sm:$0xf]
    %v620 = vld [vmem:[#allocation5 + $0x1b0] sm:$0xf]
    %v621 = vld [vmem:[#allocation5 + $0x1bc] sm:$0xf]
    %v622 = vld [vmem:[#allocation5 + $0x1c8] sm:$0xf]
    %v623 = vld [vmem:[#allocation5 + $0x1d4] sm:$0xf]
    %v624 = vld [vmem:[#allocation5 + $0x1e0] sm:$0xf]
    %v625 = vld [vmem:[#allocation5 + $0x1ec] sm:$0xf]
    %v626 = vld [vmem:[#allocation5 + $0x1f8] sm:$0xf]
    %v627 = vld [vmem:[#allocation5 + $0x204] sm:$0xf]
    %v628 = vld [vmem:[#allocation5 + $0x210] sm:$0xf]
    %v629 = vld [vmem:[#allocation5 + $0x21c] sm:$0xf]
    %v630 = vld [vmem:[#allocation5 + $0x228] sm:$0xf]
    %v631 = vld [vmem:[#allocation5 + $0x234] sm:$0xf]
    %v680 = vunpack.c.l.b16 %v584
    %v681 = vunpack.c.l.b16 %v585
    %v682 = vunpack.c.l.b16 %v586
    %v683 = vunpack.c.l.b16 %v587
    %v684 = vunpack.c.l.b16 %v588
    %v685 = vunpack.c.l.b16 %v589
    %v686 = vunpack.c.l.b16 %v590
    %v687 = vunpack.c.l.b16 %v591
    %v688 = vunpack.c.l.b16 %v592
    %v689 = vunpack.c.l.b16 %v593
    %v690 = vunpack.c.l.b16 %v594
    %v691 = vunpack.c.l.b16 %v595
    %v692 = vunpack.c.l.b16 %v596
    %v693 = vunpack.c.l.b16 %v597
    %v694 = vunpack.c.l.b16 %v598
    %v695 = vunpack.c.l.b16 %v599
    %v696 = vunpack.c.l.b16 %v600
    %v697 = vunpack.c.l.b16 %v601
    %v698 = vunpack.c.l.b16 %v602
    %v699 = vunpack.c.l.b16 %v603
    %v700 = vunpack.c.l.b16 %v604
    %v701 = vunpack.c.l.b16 %v605
    %v702 = vunpack.c.l.b16 %v606
    %v703 = vunpack.c.l.b16 %v607
    %v704 = vunpack.c.l.b16 %v608
    %v705 = vunpack.c.l.b16 %v609
    %v706 = vunpack.c.l.b16 %v610
    %v707 = vunpack.c.l.b16 %v611
    %v708 = vunpack.c.l.b16 %v612
    %v709 = vunpack.c.l.b16 %v613
    %v710 = vunpack.c.l.b16 %v614
    %v711 = vunpack.c.l.b16 %v615
    %v712 = vunpack.c.l.b16 %v616
    %v713 = vunpack.c.l.b16 %v617
    %v714 = vunpack.c.l.b16 %v618
    %v715 = vunpack.c.l.b16 %v619
    %v716 = vunpack.c.l.b16 %v620
    %v717 = vunpack.c.l.b16 %v621
    %v718 = vunpack.c.l.b16 %v622
    %v719 = vunpack.c.l.b16 %v623
    %v720 = vunpack.c.l.b16 %v624
    %v721 = vunpack.c.l.b16 %v625
    %v722 = vunpack.c.l.b16 %v626
    %v723 = vunpack.c.l.b16 %v627
    %v724 = vunpack.c.l.b16 %v628
    %v725 = vunpack.c.l.b16 %v629
    %v726 = vunpack.c.l.b16 %v630
    %v727 = vunpack.c.l.b16 %v631
    %v728 = vpack.c.b16 %v681, %v680
    %v729 = vpack.c.b16 %v683, %v682
    %v730 = vpack.c.b16 %v685, %v684
    %v731 = vpack.c.b16 %v687, %v686
    %v732 = vpack.c.b16 %v689, %v688
    %v733 = vpack.c.b16 %v691, %v690
    %v734 = vpack.c.b16 %v693, %v692
    %v735 = vpack.c.b16 %v695, %v694
    %v736 = vpack.c.b16 %v697, %v696
    %v737 = vpack.c.b16 %v699, %v698
    %v738 = vpack.c.b16 %v701, %v700
    %v739 = vpack.c.b16 %v703, %v702
    %v740 = vpack.c.b16 %v705, %v704
    %v741 = vpack.c.b16 %v707, %v706
    %v742 = vpack.c.b16 %v709, %v708
    %v743 = vpack.c.b16 %v711, %v710
    %v744 = vpack.c.b16 %v713, %v712
    %v745 = vpack.c.b16 %v715, %v714
    %v746 = vpack.c.b16 %v717, %v716
    %v747 = vpack.c.b16 %v719, %v718
    %v748 = vpack.c.b16 %v721, %v720
    %v749 = vpack.c.b16 %v723, %v722
    %v750 = vpack.c.b16 %v725, %v724
    %v751 = vpack.c.b16 %v727, %v726
    %776 = vmatprep.subr.bf16.mxu0 0
    %777 = vmatpush1.bf16.msra.mxu0 %v728
    %778 = vmatprep.subr.bf16.mxu0 0
    %779 = vmatpush1.bf16.msra.mxu0 %v729
    %780 = vmatprep.subr.bf16.mxu0 0
    %781 = vmatpush1.bf16.msra.mxu0 %v730
    %782 = vmatprep.subr.bf16.mxu0 0
    %783 = vmatpush1.bf16.msra.mxu0 %v731
    %784 = vmatprep.subr.bf16.mxu0 0
    %785 = vmatpush1.bf16.msra.mxu0 %v732
    %786 = vmatprep.subr.bf16.mxu0 0
    %787 = vmatpush1.bf16.msra.mxu0 %v733
    %788 = vmatprep.subr.bf16.mxu0 0
    %789 = vmatpush1.bf16.msra.mxu0 %v734
    %790 = vmatprep.subr.bf16.mxu0 0
    %791 = vmatpush1.bf16.msra.mxu0 %v735
    %792 = vmatprep.subr.bf16.mxu0 0
    %793 = vmatpush1.bf16.msra.mxu0 %v736
    %794 = vmatprep.subr.bf16.mxu0 0
    %795 = vmatpush1.bf16.msra.mxu0 %v737
    %796 = vmatprep.subr.bf16.mxu0 0
    %797 = vmatpush1.bf16.msra.mxu0 %v738
    %798 = vmatprep.subr.bf16.mxu0 0
    %799 = vmatpush1.bf16.msra.mxu0 %v739
    %800 = vmatprep.subr.bf16.mxu0 0
    %801 = vmatpush1.bf16.msra.mxu0 %v740
    %802 = vmatprep.subr.bf16.mxu0 0
    %803 = vmatpush1.bf16.msra.mxu0 %v741
    %804 = vmatprep.subr.bf16.mxu0 0
    %805 = vmatpush1.bf16.msra.mxu0 %v742
    %806 = vmatprep.subr.bf16.mxu0 0
    %807 = vmatpush1.bf16.msra.mxu0 %v743
    %808 = vmatprep.mubr.bf16.mxu0 %v322
    %809 = vmatmul.mubr.bf16.gmra.mrb[0].mxu0 %v238
    %v810 = vpop.f32.mrb[0].mxu0
    %v811 = vadd.f32 0.0, %v810
    %v812 = vpop.f32.mrb[0].mxu0
    %v813 = vpop.f32.mrb[0].mxu0
    %v814 = vadd.f32 0.0, %v813
    %v815 = vpop.f32.mrb[0].mxu0
    %816 = vmatprep.mubr.bf16.mxu0 %v323
    %817 = vmatmul.mubr.bf16.gmra.mrb[0].mxu0 %v239
    %v818 = vpop.f32.mrb[0].mxu0
    %v819 = vadd.f32 0.0, %v818
    %v820 = vpop.f32.mrb[0].mxu0
    %v821 = vpop.f32.mrb[0].mxu0
    %v822 = vadd.f32 0.0, %v821
    %v823 = vpop.f32.mrb[0].mxu0
    %824 = vmatprep.mubr.bf16.mxu0 %v324
    %825 = vmatmul.mubr.bf16.gmra.mrb[0].mxu0 %v240
    %v826 = vpop.f32.mrb[0].mxu0
    %v827 = vadd.f32 0.0, %v826
    %v828 = vpop.f32.mrb[0].mxu0
    %v829 = vpop.f32.mrb[0].mxu0
    %v830 = vadd.f32 0.0, %v829
    %v831 = vpop.f32.mrb[0].mxu0
    %832 = vmatprep.mubr.bf16.mxu0 %v325
    %833 = vmatmul.mubr.bf16.gmra.mrb[0].mxu0 %v241
    %v834 = vpop.f32.mrb[0].mxu0
    %v835 = vadd.f32 0.0, %v834
    %v836 = vpop.f32.mrb[0].mxu0
    %v837 = vpop.f32.mrb[0].mxu0
    %v838 = vadd.f32 0.0, %v837
    %v839 = vpop.f32.mrb[0].mxu0
    %840 = vmatprep.mubr.bf16.mxu0 %v326
    %841 = vmatmul.mubr.bf16.gmra.mrb[0].mxu0 %v242
    %v842 = vpop.f32.mrb[0].mxu0
    %v843 = vadd.f32 0.0, %v842
    %v844 = vpop.f32.mrb[0].mxu0
    %v845 = vpop.f32.mrb[0].mxu0
    %v846 = vadd.f32 0.0, %v845
    %v847 = vpop.f32.mrb[0].mxu0
    %848 = vmatprep.mubr.bf16.mxu0 %v327
    %849 = vmatmul.mubr.bf16.gmra.mrb[0].mxu0 %v243
    %v850 = vpop.f32.mrb[0].mxu0
    %v851 = vadd.f32 0.0, %v850
    %v852 = vpop.f32.mrb[0].mxu0
    %v853 = vpop.f32.mrb[0].mxu0
    %v854 = vadd.f32 0.0, %v853
    %v855 = vpop.f32.mrb[0].mxu0
    %856 = vmatprep.mubr.bf16.mxu0 %v328
    %857 = vmatmul.mubr.bf16.gmra.mrb[0].mxu0 %v244
    %v858 = vpop.f32.mrb[0].mxu0
    %v859 = vadd.f32 0.0, %v858
    %v860 = vpop.f32.mrb[0].mxu0
    %v861 = vpop.f32.mrb[0].mxu0
    %v862 = vadd.f32 0.0, %v861
    %v863 = vpop.f32.mrb[0].mxu0
    %864 = vmatprep.mubr.bf16.mxu0 %v329
    %865 = vmatmul.mubr.bf16.gmra.mrb[0].mxu0 %v245
    %v866 = vpop.f32.mrb[0].mxu0
    %v867 = vadd.f32 0.0, %v866
    %v868 = vpop.f32.mrb[0].mxu0
    %v869 = vpop.f32.mrb[0].mxu0
    %v870 = vadd.f32 0.0, %v869
    %v871 = vpop.f32.mrb[0].mxu0
    %872 = vmatprep.mubr.bf16.mxu0 %v330
    %873 = vmatmul.mubr.bf16.gmra.mrb[0].mxu0 %v246
    %v874 = vpop.f32.mrb[0].mxu0
    %v875 = vadd.f32 0.0, %v874
    %v876 = vpop.f32.mrb[0].mxu0
    %v877 = vpop.f32.mrb[0].mxu0
    %v878 = vadd.f32 0.0, %v877
    %v879 = vpop.f32.mrb[0].mxu0
    %880 = vmatprep.mubr.bf16.mxu0 %v331
    %881 = vmatmul.mubr.bf16.gmra.mrb[0].mxu0 %v247
    %v882 = vpop.f32.mrb[0].mxu0
    %v883 = vadd.f32 0.0, %v882
    %v884 = vpop.f32.mrb[0].mxu0
    %v885 = vpop.f32.mrb[0].mxu0
    %v886 = vadd.f32 0.0, %v885
    %v887 = vpop.f32.mrb[0].mxu0
    %888 = vmatprep.mubr.bf16.mxu0 %v332
    %889 = vmatmul.mubr.bf16.gmra.mrb[0].mxu0 %v248
    %v890 = vpop.f32.mrb[0].mxu0
    %v891 = vadd.f32 0.0, %v890
    %v892 = vpop.f32.mrb[0].mxu0
    %v893 = vpop.f32.mrb[0].mxu0
    %v894 = vadd.f32 0.0, %v893
    %v895 = vpop.f32.mrb[0].mxu0
    %896 = vmatprep.mubr.bf16.mxu0 %v333
    %897 = vmatmul.mubr.bf16.gmra.mrb[0].mxu0 %v249
    %v898 = vpop.f32.mrb[0].mxu0
    %v899 = vadd.f32 0.0, %v898
    %v900 = vpop.f32.mrb[0].mxu0
    %v901 = vpop.f32.mrb[0].mxu0
    %v902 = vadd.f32 0.0, %v901
    %v903 = vpop.f32.mrb[0].mxu0
    %904 = vmatprep.mubr.bf16.mxu0 %v334
    %905 = vmatmul.mubr.bf16.gmra.mrb[0].mxu0 %v250
    %v906 = vpop.f32.mrb[0].mxu0
    %v907 = vadd.f32 0.0, %v906
    %v908 = vpop.f32.mrb[0].mxu0
    %v909 = vpop.f32.mrb[0].mxu0
    %v910 = vadd.f32 0.0, %v909
    %v911 = vpop.f32.mrb[0].mxu0
    %912 = vmatprep.mubr.bf16.mxu0 %v335
    %913 = vmatmul.mubr.bf16.gmra.mrb[0].mxu0 %v251
    %v914 = vpop.f32.mrb[0].mxu0
    %v915 = vadd.f32 0.0, %v914
    %v916 = vpop.f32.mrb[0].mxu0
    %v917 = vpop.f32.mrb[0].mxu0
    %v918 = vadd.f32 0.0, %v917
    %v919 = vpop.f32.mrb[0].mxu0
    %920 = vdwg.mxu0
    %921 = vmatprep.subr.bf16.mxu0 0
    %922 = vmatpush1.bf16.msra.mxu0 %v744
    %923 = vmatprep.subr.bf16.mxu0 0
    %924 = vmatpush1.bf16.msra.mxu0 %v745
    %925 = vmatprep.subr.bf16.mxu0 0
    %926 = vmatpush1.bf16.msra.mxu0 %v746
    %927 = vmatprep.subr.bf16.mxu0 0
    %928 = vmatpush1.bf16.msra.mxu0 %v747
    %929 = vmatprep.subr.bf16.mxu0 0
    %930 = vmatpush1.bf16.msra.mxu0 %v748
    %931 = vmatprep.subr.bf16.mxu0 0
    %932 = vmatpush1.bf16.msra.mxu0 %v749
    %933 = vmatprep.subr.bf16.mxu0 0
    %934 = vmatpush1.bf16.msra.mxu0 %v750
    %935 = vmatprep.subr.bf16.mxu0 0
    %936 = vmatpush1.bf16.msra.mxu0 %v751
    %937 = vmatprep.subr.bf16.mxu0 0
    %938 = vmatpush1.bf16.msra.mxu0 0
    %939 = vmatprep.subr.bf16.mxu0 0
    %940 = vmatpush1.bf16.msra.mxu0 0
    %941 = vmatprep.subr.bf16.mxu0 0
    %942 = vmatpush1.bf16.msra.mxu0 0
    %943 = vmatprep.subr.bf16.mxu0 0
    %944 = vmatpush1.bf16.msra.mxu0 0
    %945 = vmatprep.subr.bf16.mxu0 0
    %946 = vmatpush1.bf16.msra.mxu0 0
    %947 = vmatprep.subr.bf16.mxu0 0
    %948 = vmatpush1.bf16.msra.mxu0 0
    %949 = vmatprep.subr.bf16.mxu0 0
    %950 = vmatpush1.bf16.msra.mxu0 0
    %951 = vmatprep.subr.bf16.mxu0 0
    %952 = vmatpush1.bf16.msra.mxu0 0
    %953 = vmatprep.mubr.bf16.mxu0 0
    %954 = vmatmul.mubr.bf16.gmra.mrb[0].mxu0 %v406
    %v955 = vpop.f32.mrb[0].mxu0
    %v956 = vadd.f32 %v811, %v955
    %v957 = vpop.f32.mrb[0].mxu0
    %v958 = vpop.f32.mrb[0].mxu0
    %v959 = vadd.f32 %v814, %v958
    %v960 = vpop.f32.mrb[0].mxu0
    %961 = vmatprep.mubr.bf16.mxu0 0
    %962 = vmatmul.mubr.bf16.gmra.mrb[0].mxu0 %v407
    %v963 = vpop.f32.mrb[0].mxu0
    %v964 = vadd.f32 %v819, %v963
    %v965 = vpop.f32.mrb[0].mxu0
    %v966 = vpop.f32.mrb[0].mxu0
    %v967 = vadd.f32 %v822, %v966
    %v968 = vpop.f32.mrb[0].mxu0
    %969 = vmatprep.mubr.bf16.mxu0 0
    %970 = vmatmul.mubr.bf16.gmra.mrb[0].mxu0 %v408
    %v971 = vpop.f32.mrb[0].mxu0
    %v972 = vadd.f32 %v827, %v971
    %v973 = vpop.f32.mrb[0].mxu0
    %v974 = vpop.f32.mrb[0].mxu0
    %v975 = vadd.f32 %v830, %v974
    %v976 = vpop.f32.mrb[0].mxu0
    %977 = vmatprep.mubr.bf16.mxu0 0
    %978 = vmatmul.mubr.bf16.gmra.mrb[0].mxu0 %v409
    %v979 = vpop.f32.mrb[0].mxu0
    %v980 = vadd.f32 %v835, %v979
    %v981 = vpop.f32.mrb[0].mxu0
    %v982 = vpop.f32.mrb[0].mxu0
    %v983 = vadd.f32 %v838, %v982
    %v984 = vpop.f32.mrb[0].mxu0
    %985 = vmatprep.mubr.bf16.mxu0 0
    %986 = vmatmul.mubr.bf16.gmra.mrb[0].mxu0 %v410
    %v987 = vpop.f32.mrb[0].mxu0
    %v988 = vadd.f32 %v843, %v987
    %v989 = vpop.f32.mrb[0].mxu0
    %v990 = vpop.f32.mrb[0].mxu0
    %v991 = vadd.f32 %v846, %v990
    %v992 = vpop.f32.mrb[0].mxu0
    %993 = vmatprep.mubr.bf16.mxu0 0
    %994 = vmatmul.mubr.bf16.gmra.mrb[0].mxu0 %v411
    %v995 = vpop.f32.mrb[0].mxu0
    %v996 = vadd.f32 %v851, %v995
    %v997 = vpop.f32.mrb[0].mxu0
    %v998 = vpop.f32.mrb[0].mxu0
    %v999 = vadd.f32 %v854, %v998
    %v1000 = vpop.f32.mrb[0].mxu0
    %1001 = vmatprep.mubr.bf16.mxu0 0
    %1002 = vmatmul.mubr.bf16.gmra.mrb[0].mxu0 %v412
    %v1003 = vpop.f32.mrb[0].mxu0
    %v1004 = vadd.f32 %v859, %v1003
    %v1005 = vpop.f32.mrb[0].mxu0
    %v1006 = vpop.f32.mrb[0].mxu0
    %v1007 = vadd.f32 %v862, %v1006
    %v1008 = vpop.f32.mrb[0].mxu0
    %1009 = vmatprep.mubr.bf16.mxu0 0
    %1010 = vmatmul.mubr.bf16.gmra.mrb[0].mxu0 %v413
    %v1011 = vpop.f32.mrb[0].mxu0
    %v1012 = vadd.f32 %v867, %v1011
    %v1013 = vpop.f32.mrb[0].mxu0
    %v1014 = vpop.f32.mrb[0].mxu0
    %v1015 = vadd.f32 %v870, %v1014
    %v1016 = vpop.f32.mrb[0].mxu0
    %1017 = vmatprep.mubr.bf16.mxu0 0
    %1018 = vmatmul.mubr.bf16.gmra.mrb[0].mxu0 %v414
    %v1019 = vpop.f32.mrb[0].mxu0
    %v1020 = vadd.f32 %v875, %v1019
    %v1021 = vpop.f32.mrb[0].mxu0
    %v1022 = vpop.f32.mrb[0].mxu0
    %v1023 = vadd.f32 %v878, %v1022
    %v1024 = vpop.f32.mrb[0].mxu0
    %1025 = vmatprep.mubr.bf16.mxu0 0
    %1026 = vmatmul.mubr.bf16.gmra.mrb[0].mxu0 %v415
    %v1027 = vpop.f32.mrb[0].mxu0
    %v1028 = vadd.f32 %v883, %v1027
    %v1029 = vpop.f32.mrb[0].mxu0
    %v1030 = vpop.f32.mrb[0].mxu0
    %v1031 = vadd.f32 %v886, %v1030
    %v1032 = vpop.f32.mrb[0].mxu0
    %1033 = vmatprep.mubr.bf16.mxu0 0
    %1034 = vmatmul.mubr.bf16.gmra.mrb[0].mxu0 %v416
    %v1035 = vpop.f32.mrb[0].mxu0
    %v1036 = vadd.f32 %v891, %v1035
    %v1037 = vpop.f32.mrb[0].mxu0
    %v1038 = vpop.f32.mrb[0].mxu0
    %v1039 = vadd.f32 %v894, %v1038
    %v1040 = vpop.f32.mrb[0].mxu0
    %1041 = vmatprep.mubr.bf16.mxu0 0
    %1042 = vmatmul.mubr.bf16.gmra.mrb[0].mxu0 %v417
    %v1043 = vpop.f32.mrb[0].mxu0
    %v1044 = vadd.f32 %v899, %v1043
    %v1045 = vpop.f32.mrb[0].mxu0
    %v1046 = vpop.f32.mrb[0].mxu0
    %v1047 = vadd.f32 %v902, %v1046
    %v1048 = vpop.f32.mrb[0].mxu0
    %1049 = vmatprep.mubr.bf16.mxu0 0
    %1050 = vmatmul.mubr.bf16.gmra.mrb[0].mxu0 %v418
    %v1051 = vpop.f32.mrb[0].mxu0
    %v1052 = vadd.f32 %v907, %v1051
    %v1053 = vpop.f32.mrb[0].mxu0
    %v1054 = vpop.f32.mrb[0].mxu0
    %v1055 = vadd.f32 %v910, %v1054
    %v1056 = vpop.f32.mrb[0].mxu0
    %1057 = vmatprep.mubr.bf16.mxu0 0
    %1058 = vmatmul.mubr.bf16.gmra.mrb[0].mxu0 %v419
    %v1059 = vpop.f32.mrb[0].mxu0
    %v1060 = vadd.f32 %v915, %v1059
    %v1061 = vpop.f32.mrb[0].mxu0
    %v1062 = vpop.f32.mrb[0].mxu0
    %v1063 = vadd.f32 %v918, %v1062
    %v1064 = vpop.f32.mrb[0].mxu0
    %1065 = vdwg.mxu0
    %v1066 = vmax.f32 %v956, %v972
    %v1067 = vmax.f32 %v964, %v980
    %v1068 = vmax.f32 %v1066, %v988
    %v1069 = vmax.f32 %v1067, %v996
    %v1070 = vmax.f32 %v1068, %v1004
    %v1071 = vmax.f32 %v1069, %v1012
    %v1072 = vmax.f32 %v1070, %v1020
    %v1073 = vmax.f32 %v1071, %v1028
    %v1074 = vmax.f32 %v1072, %v1036
    %v1075 = vmax.f32 %v1073, %v1044
    %v1076 = vmax.f32 %v1074, %v1052
    %v1077 = vmax.f32 %v1075, %v1060
    %v1078 = vmax.f32 %v1076, %v1077
    %v1079 = vmax.f32 %v959, %v975
    %v1080 = vmax.f32 %v967, %v983
    %v1081 = vmax.f32 %v1079, %v991
    %v1082 = vmax.f32 %v1080, %v999
    %v1083 = vmax.f32 %v1081, %v1007
    %v1084 = vmax.f32 %v1082, %v1015
    %v1085 = vmax.f32 %v1083, %v1023
    %v1086 = vmax.f32 %v1084, %v1031
    %v1087 = vmax.f32 %v1085, %v1039
    %v1088 = vmax.f32 %v1086, %v1047
    %v1089 = vmax.f32 %v1087, %v1055
    %v1090 = vmax.f32 %v1088, %v1063
    %v1091 = vmax.f32 %v1089, %v1090
    %v1092 = vld [vmem:[%s2] sm:$0x1]
    %v1094 = vlaneseq
    %v1095 = vshrl.u32 %v1094, 7
    %v1096 = vsub.s32 0, %v1095
    %v1097 = vrot.slane %v1092, %v1096
    %v1099 = vadd.f32 %v1078, %v1097
    %v1100 = vadd.f32 %v1091, %v1097
    %v1101 = vmax.f32 %v1099, 0.0
    %v1102 = vmax.f32 %v1100, 0.0
    %1103 = vst [vmem:[#allocation7] sm:$0xff] %v1101
    %1104 = vst [vmem:[#allocation7 + $0x18] sm:$0xff] %v1102
    %v1105 = vld [vmem:[#allocation5 + $0x4] sm:$0xf]
    %v1106 = vld [vmem:[#allocation5 + $0x10] sm:$0xf]
    %v1107 = vld [vmem:[#allocation5 + $0x1c] sm:$0xf]
    %v1108 = vld [vmem:[#allocation5 + $0x28] sm:$0xf]
    %v1109 = vld [vmem:[#allocation5 + $0x34] sm:$0xf]
    %v1110 = vld [vmem:[#allocation5 + $0x40] sm:$0xf]
    %v1111 = vld [vmem:[#allocation5 + $0x4c] sm:$0xf]
    %v1112 = vld [vmem:[#allocation5 + $0x58] sm:$0xf]
    %v1113 = vld [vmem:[#allocation5 + $0x64] sm:$0xf]
    %v1114 = vld [vmem:[#allocation5 + $0x70] sm:$0xf]
    %v1115 = vld [vmem:[#allocation5 + $0x7c] sm:$0xf]
    %v1116 = vld [vmem:[#allocation5 + $0x88] sm:$0xf]
    %v1117 = vld [vmem:[#allocation5 + $0x94] sm:$0xf]
    %v1118 = vld [vmem:[#allocation5 + $0xa0] sm:$0xf]
    %v1119 = vld [vmem:[#allocation5 + $0xac] sm:$0xf]
    %v1120 = vld [vmem:[#allocation5 + $0xb8] sm:$0xf]
    %v1121 = vld [vmem:[#allocation5 + $0xc4] sm:$0xf]
    %v1122 = vld [vmem:[#allocation5 + $0xd0] sm:$0xf]
    %v1123 = vld [vmem:[#allocation5 + $0xdc] sm:$0xf]
    %v1124 = vld [vmem:[#allocation5 + $0xe8] sm:$0xf]
    %v1125 = vld [vmem:[#allocation5 + $0xf4] sm:$0xf]
    %v1126 = vld [vmem:[#allocation5 + $0x100] sm:$0xf]
    %v1127 = vld [vmem:[#allocation5 + $0x10c] sm:$0xf]
    %v1128 = vld [vmem:[#allocation5 + $0x118] sm:$0xf]
    %v1129 = vld [vmem:[#allocation5 + $0x124] sm:$0xf]
    %v1130 = vld [vmem:[#allocation5 + $0x130] sm:$0xf]
    %v1131 = vld [vmem:[#allocation5 + $0x13c] sm:$0xf]
    %v1132 = vld [vmem:[#allocation5 + $0x148] sm:$0xf]
    %v1133 = vld [vmem:[#allocation5 + $0x154] sm:$0xf]
    %v1134 = vld [vmem:[#allocation5 + $0x160] sm:$0xf]
    %v1135 = vld [vmem:[#allocation5 + $0x16c] sm:$0xf]
    %v1136 = vld [vmem:[#allocation5 + $0x178] sm:$0xf]
    %v1137 = vld [vmem:[#allocation5 + $0x184] sm:$0xf]
    %v1138 = vld [vmem:[#allocation5 + $0x190] sm:$0xf]
    %v1139 = vld [vmem:[#allocation5 + $0x19c] sm:$0xf]
    %v1140 = vld [vmem:[#allocation5 + $0x1a8] sm:$0xf]
    %v1141 = vld [vmem:[#allocation5 + $0x1b4] sm:$0xf]
    %v1142 = vld [vmem:[#allocation5 + $0x1c0] sm:$0xf]
    %v1143 = vld [vmem:[#allocation5 + $0x1cc] sm:$0xf]
    %v1144 = vld [vmem:[#allocation5 + $0x1d8] sm:$0xf]
    %v1145 = vld [vmem:[#allocation5 + $0x1e4] sm:$0xf]
    %v1146 = vld [vmem:[#allocation5 + $0x1f0] sm:$0xf]
    %v1147 = vld [vmem:[#allocation5 + $0x1fc] sm:$0xf]
    %v1148 = vld [vmem:[#allocation5 + $0x208] sm:$0xf]
    %v1149 = vld [vmem:[#allocation5 + $0x214] sm:$0xf]
    %v1150 = vld [vmem:[#allocation5 + $0x220] sm:$0xf]
    %v1151 = vld [vmem:[#allocation5 + $0x22c] sm:$0xf]
    %v1152 = vld [vmem:[#allocation5 + $0x238] sm:$0xf]
    %v1153 = vld [vmem:[#allocation5 + $0x244] sm:$0xf]
    %v1154 = vld [vmem:[#allocation5 + $0x250] sm:$0xf]
    %v1155 = vld [vmem:[#allocation5 + $0x25c] sm:$0xf]
    %v1156 = vld [vmem:[#allocation5 + $0x268] sm:$0xf]
    %v1157 = vld [vmem:[#allocation5 + $0x274] sm:$0xf]
    %v1158 = vld [vmem:[#allocation5 + $0x280] sm:$0xf]
    %v1159 = vld [vmem:[#allocation5 + $0x28c] sm:$0xf]
    %v1160 = vld [vmem:[#allocation5 + $0x298] sm:$0xf]
    %v1161 = vld [vmem:[#allocation5 + $0x2a4] sm:$0xf]
    %v1162 = vld [vmem:[#allocation5 + $0x2b0] sm:$0xf]
    %v1163 = vld [vmem:[#allocation5 + $0x2bc] sm:$0xf]
    %v1164 = vld [vmem:[#allocation5 + $0x2c8] sm:$0xf]
    %v1165 = vld [vmem:[#allocation5 + $0x2d4] sm:$0xf]
    %v1166 = vld [vmem:[#allocation5 + $0x2e0] sm:$0xf]
    %v1167 = vld [vmem:[#allocation5 + $0x2ec] sm:$0xf]
    %v1168 = vld [vmem:[#allocation5 + $0x2f8] sm:$0xf]
    %v1233 = vunpack.c.l.b16 %v1105
    %v1234 = vunpack.c.l.b16 %v1106
    %v1235 = vunpack.c.l.b16 %v1107
    %v1236 = vunpack.c.l.b16 %v1108
    %v1237 = vunpack.c.l.b16 %v1109
    %v1238 = vunpack.c.l.b16 %v1110
    %v1239 = vunpack.c.l.b16 %v1111
    %v1240 = vunpack.c.l.b16 %v1112
    %v1241 = vunpack.c.l.b16 %v1113
    %v1242 = vunpack.c.l.b16 %v1114
    %v1243 = vunpack.c.l.b16 %v1115
    %v1244 = vunpack.c.l.b16 %v1116
    %v1245 = vunpack.c.l.b16 %v1117
    %v1246 = vunpack.c.l.b16 %v1118
    %v1247 = vunpack.c.l.b16 %v1119
    %v1248 = vunpack.c.l.b16 %v1120
    %v1249 = vunpack.c.l.b16 %v1121
    %v1250 = vunpack.c.l.b16 %v1122
    %v1251 = vunpack.c.l.b16 %v1123
    %v1252 = vunpack.c.l.b16 %v1124
    %v1253 = vunpack.c.l.b16 %v1125
    %v1254 = vunpack.c.l.b16 %v1126
    %v1255 = vunpack.c.l.b16 %v1127
    %v1256 = vunpack.c.l.b16 %v1128
    %v1257 = vunpack.c.l.b16 %v1129
    %v1258 = vunpack.c.l.b16 %v1130
    %v1259 = vunpack.c.l.b16 %v1131
    %v1260 = vunpack.c.l.b16 %v1132
    %v1261 = vunpack.c.l.b16 %v1133
    %v1262 = vunpack.c.l.b16 %v1134
    %v1263 = vunpack.c.l.b16 %v1135
    %v1264 = vunpack.c.l.b16 %v1136
    %v1265 = vunpack.c.l.b16 %v1137
    %v1266 = vunpack.c.l.b16 %v1138
    %v1267 = vunpack.c.l.b16 %v1139
    %v1268 = vunpack.c.l.b16 %v1140
    %v1269 = vunpack.c.l.b16 %v1141
    %v1270 = vunpack.c.l.b16 %v1142
    %v1271 = vunpack.c.l.b16 %v1143
    %v1272 = vunpack.c.l.b16 %v1144
    %v1273 = vunpack.c.l.b16 %v1145
    %v1274 = vunpack.c.l.b16 %v1146
    %v1275 = vunpack.c.l.b16 %v1147
    %v1276 = vunpack.c.l.b16 %v1148
    %v1277 = vunpack.c.l.b16 %v1149
    %v1278 = vunpack.c.l.b16 %v1150
    %v1279 = vunpack.c.l.b16 %v1151
    %v1280 = vunpack.c.l.b16 %v1152
    %v1281 = vunpack.c.l.b16 %v1153
    %v1282 = vunpack.c.l.b16 %v1154
    %v1283 = vunpack.c.l.b16 %v1155
    %v1284 = vunpack.c.l.b16 %v1156
    %v1285 = vunpack.c.l.b16 %v1157
    %v1286 = vunpack.c.l.b16 %v1158
    %v1287 = vunpack.c.l.b16 %v1159
    %v1288 = vunpack.c.l.b16 %v1160
    %v1289 = vunpack.c.l.b16 %v1161
    %v1290 = vunpack.c.l.b16 %v1162
    %v1291 = vunpack.c.l.b16 %v1163
    %v1292 = vunpack.c.l.b16 %v1164
    %v1293 = vunpack.c.l.b16 %v1165
    %v1294 = vunpack.c.l.b16 %v1166
    %v1295 = vunpack.c.l.b16 %v1167
    %v1296 = vunpack.c.l.b16 %v1168
    %v1297 = vpack.c.b16 %v1234, %v1233
    %v1298 = vpack.c.b16 %v1236, %v1235
    %v1299 = vpack.c.b16 %v1238, %v1237
    %v1300 = vpack.c.b16 %v1240, %v1239
    %v1301 = vpack.c.b16 %v1242, %v1241
    %v1302 = vpack.c.b16 %v1244, %v1243
    %v1303 = vpack.c.b16 %v1246, %v1245
    %v1304 = vpack.c.b16 %v1248, %v1247
    %v1305 = vpack.c.b16 %v1250, %v1249
    %v1306 = vpack.c.b16 %v1252, %v1251
    %v1307 = vpack.c.b16 %v1254, %v1253
    %v1308 = vpack.c.b16 %v1256, %v1255
    %v1309 = vpack.c.b16 %v1258, %v1257
    %v1310 = vpack.c.b16 %v1260, %v1259
    %v1311 = vpack.c.b16 %v1262, %v1261
    %v1312 = vpack.c.b16 %v1264, %v1263
    %v1313 = vpack.c.b16 %v1266, %v1265
    %v1314 = vpack.c.b16 %v1268, %v1267
    %v1315 = vpack.c.b16 %v1270, %v1269
    %v1316 = vpack.c.b16 %v1272, %v1271
    %v1317 = vpack.c.b16 %v1274, %v1273
    %v1318 = vpack.c.b16 %v1276, %v1275
    %v1319 = vpack.c.b16 %v1278, %v1277
    %v1320 = vpack.c.b16 %v1280, %v1279
    %v1321 = vpack.c.b16 %v1282, %v1281
    %v1322 = vpack.c.b16 %v1284, %v1283
    %v1323 = vpack.c.b16 %v1286, %v1285
    %v1324 = vpack.c.b16 %v1288, %v1287
    %v1325 = vpack.c.b16 %v1290, %v1289
    %v1326 = vpack.c.b16 %v1292, %v1291
    %v1327 = vpack.c.b16 %v1294, %v1293
    %v1328 = vpack.c.b16 %v1296, %v1295
    %1361 = vmatprep.subr.bf16.mxu0 0
    %1362 = vmatpush1.bf16.msra.mxu0 %v1297
    %1363 = vmatprep.subr.bf16.mxu0 0
    %1364 = vmatpush1.bf16.msra.mxu0 %v1298
    %1365 = vmatprep.subr.bf16.mxu0 0
    %1366 = vmatpush1.bf16.msra.mxu0 %v1299
    %1367 = vmatprep.subr.bf16.mxu0 0
    %1368 = vmatpush1.bf16.msra.mxu0 %v1300
    %1369 = vmatprep.subr.bf16.mxu0 0
    %1370 = vmatpush1.bf16.msra.mxu0 %v1301
    %1371 = vmatprep.subr.bf16.mxu0 0
    %1372 = vmatpush1.bf16.msra.mxu0 %v1302
    %1373 = vmatprep.subr.bf16.mxu0 0
    %1374 = vmatpush1.bf16.msra.mxu0 %v1303
    %1375 = vmatprep.subr.bf16.mxu0 0
    %1376 = vmatpush1.bf16.msra.mxu0 %v1304
    %1377 = vmatprep.subr.bf16.mxu0 0
    %1378 = vmatpush1.bf16.msra.mxu0 %v1305
    %1379 = vmatprep.subr.bf16.mxu0 0
    %1380 = vmatpush1.bf16.msra.mxu0 %v1306
    %1381 = vmatprep.subr.bf16.mxu0 0
    %1382 = vmatpush1.bf16.msra.mxu0 %v1307
    %1383 = vmatprep.subr.bf16.mxu0 0
    %1384 = vmatpush1.bf16.msra.mxu0 %v1308
    %1385 = vmatprep.subr.bf16.mxu0 0
    %1386 = vmatpush1.bf16.msra.mxu0 %v1309
    %1387 = vmatprep.subr.bf16.mxu0 0
    %1388 = vmatpush1.bf16.msra.mxu0 %v1310
    %1389 = vmatprep.subr.bf16.mxu0 0
    %1390 = vmatpush1.bf16.msra.mxu0 %v1311
    %1391 = vmatprep.subr.bf16.mxu0 0
    %1392 = vmatpush1.bf16.msra.mxu0 %v1312
    %1393 = vmatprep.mubr.bf16.mxu0 %v322
    %1394 = vmatmul.mubr.bf16.gmra.mrb[0].mxu0 %v238
    %v1395 = vpop.f32.mrb[0].mxu0
    %v1396 = vadd.f32 0.0, %v1395
    %v1397 = vpop.f32.mrb[0].mxu0
    %v1398 = vpop.f32.mrb[0].mxu0
    %v1399 = vadd.f32 0.0, %v1398
    %v1400 = vpop.f32.mrb[0].mxu0
    %1401 = vmatprep.mubr.bf16.mxu0 %v323
    %1402 = vmatmul.mubr.bf16.gmra.mrb[0].mxu0 %v239
    %v1403 = vpop.f32.mrb[0].mxu0
    %v1404 = vadd.f32 0.0, %v1403
    %v1405 = vpop.f32.mrb[0].mxu0
    %v1406 = vpop.f32.mrb[0].mxu0
    %v1407 = vadd.f32 0.0, %v1406
    %v1408 = vpop.f32.mrb[0].mxu0
    %1409 = vmatprep.mubr.bf16.mxu0 %v324
    %1410 = vmatmul.mubr.bf16.gmra.mrb[0].mxu0 %v240
    %v1411 = vpop.f32.mrb[0].mxu0
    %v1412 = vadd.f32 0.0, %v1411
    %v1413 = vpop.f32.mrb[0].mxu0
    %v1414 = vpop.f32.mrb[0].mxu0
    %v1415 = vadd.f32 0.0, %v1414
    %v1416 = vpop.f32.mrb[0].mxu0
    %1417 = vmatprep.mubr.bf16.mxu0 %v325
    %1418 = vmatmul.mubr.bf16.gmra.mrb[0].mxu0 %v241
    %v1419 = vpop.f32.mrb[0].mxu0
    %v1420 = vadd.f32 0.0, %v1419
    %v1421 = vpop.f32.mrb[0].mxu0
    %v1422 = vpop.f32.mrb[0].mxu0
    %v1423 = vadd.f32 0.0, %v1422
    %v1424 = vpop.f32.mrb[0].mxu0
    %1425 = vmatprep.mubr.bf16.mxu0 %v326
    %1426 = vmatmul.mubr.bf16.gmra.mrb[0].mxu0 %v242
    %v1427 = vpop.f32.mrb[0].mxu0
    %v1428 = vadd.f32 0.0, %v1427
    %v1429 = vpop.f32.mrb[0].mxu0
    %v1430 = vpop.f32.mrb[0].mxu0
    %v1431 = vadd.f32 0.0, %v1430
    %v1432 = vpop.f32.mrb[0].mxu0
    %1433 = vmatprep.mubr.bf16.mxu0 %v327
    %1434 = vmatmul.mubr.bf16.gmra.mrb[0].mxu0 %v243
    %v1435 = vpop.f32.mrb[0].mxu0
    %v1436 = vadd.f32 0.0, %v1435
    %v1437 = vpop.f32.mrb[0].mxu0
    %v1438 = vpop.f32.mrb[0].mxu0
    %v1439 = vadd.f32 0.0, %v1438
    %v1440 = vpop.f32.mrb[0].mxu0
    %1441 = vmatprep.mubr.bf16.mxu0 %v328
    %1442 = vmatmul.mubr.bf16.gmra.mrb[0].mxu0 %v244
    %v1443 = vpop.f32.mrb[0].mxu0
    %v1444 = vadd.f32 0.0, %v1443
    %v1445 = vpop.f32.mrb[0].mxu0
    %v1446 = vpop.f32.mrb[0].mxu0
    %v1447 = vadd.f32 0.0, %v1446
    %v1448 = vpop.f32.mrb[0].mxu0
    %1449 = vmatprep.mubr.bf16.mxu0 %v329
    %1450 = vmatmul.mubr.bf16.gmra.mrb[0].mxu0 %v245
    %v1451 = vpop.f32.mrb[0].mxu0
    %v1452 = vadd.f32 0.0, %v1451
    %v1453 = vpop.f32.mrb[0].mxu0
    %v1454 = vpop.f32.mrb[0].mxu0
    %v1455 = vadd.f32 0.0, %v1454
    %v1456 = vpop.f32.mrb[0].mxu0
    %1457 = vmatprep.mubr.bf16.mxu0 %v330
    %1458 = vmatmul.mubr.bf16.gmra.mrb[0].mxu0 %v246
    %v1459 = vpop.f32.mrb[0].mxu0
    %v1460 = vadd.f32 0.0, %v1459
    %v1461 = vpop.f32.mrb[0].mxu0
    %v1462 = vpop.f32.mrb[0].mxu0
    %v1463 = vadd.f32 0.0, %v1462
    %v1464 = vpop.f32.mrb[0].mxu0
    %1465 = vmatprep.mubr.bf16.mxu0 %v331
    %1466 = vmatmul.mubr.bf16.gmra.mrb[0].mxu0 %v247
    %v1467 = vpop.f32.mrb[0].mxu0
    %v1468 = vadd.f32 0.0, %v1467
    %v1469 = vpop.f32.mrb[0].mxu0
    %v1470 = vpop.f32.mrb[0].mxu0
    %v1471 = vadd.f32 0.0, %v1470
    %v1472 = vpop.f32.mrb[0].mxu0
    %1473 = vmatprep.mubr.bf16.mxu0 %v332
    %1474 = vmatmul.mubr.bf16.gmra.mrb[0].mxu0 %v248
    %v1475 = vpop.f32.mrb[0].mxu0
    %v1476 = vadd.f32 0.0, %v1475
    %v1477 = vpop.f32.mrb[0].mxu0
    %v1478 = vpop.f32.mrb[0].mxu0
    %v1479 = vadd.f32 0.0, %v1478
    %v1480 = vpop.f32.mrb[0].mxu0
    %1481 = vmatprep.mubr.bf16.mxu0 %v333
    %1482 = vmatmul.mubr.bf16.gmra.mrb[0].mxu0 %v249
    %v1483 = vpop.f32.mrb[0].mxu0
    %v1484 = vadd.f32 0.0, %v1483
    %v1485 = vpop.f32.mrb[0].mxu0
    %v1486 = vpop.f32.mrb[0].mxu0
    %v1487 = vadd.f32 0.0, %v1486
    %v1488 = vpop.f32.mrb[0].mxu0
    %1489 = vmatprep.mubr.bf16.mxu0 %v334
    %1490 = vmatmul.mubr.bf16.gmra.mrb[0].mxu0 %v250
    %v1491 = vpop.f32.mrb[0].mxu0
    %v1492 = vadd.f32 0.0, %v1491
    %v1493 = vpop.f32.mrb[0].mxu0
    %v1494 = vpop.f32.mrb[0].mxu0
    %v1495 = vadd.f32 0.0, %v1494
    %v1496 = vpop.f32.mrb[0].mxu0
    %1497 = vdwg.mxu0
    %1498 = vmatprep.subr.bf16.mxu0 0
    %1499 = vmatpush1.bf16.msra.mxu0 %v1313
    %1500 = vmatprep.subr.bf16.mxu0 0
    %1501 = vmatpush1.bf16.msra.mxu0 %v1314
    %1502 = vmatprep.subr.bf16.mxu0 0
    %1503 = vmatpush1.bf16.msra.mxu0 %v1315
    %1504 = vmatprep.subr.bf16.mxu0 0
    %1505 = vmatpush1.bf16.msra.mxu0 %v1316
    %1506 = vmatprep.subr.bf16.mxu0 0
    %1507 = vmatpush1.bf16.msra.mxu0 %v1317
    %1508 = vmatprep.subr.bf16.mxu0 0
    %1509 = vmatpush1.bf16.msra.mxu0 %v1318
    %1510 = vmatprep.subr.bf16.mxu0 0
    %1511 = vmatpush1.bf16.msra.mxu0 %v1319
    %1512 = vmatprep.subr.bf16.mxu0 0
    %1513 = vmatpush1.bf16.msra.mxu0 %v1320
    %1514 = vmatprep.subr.bf16.mxu0 0
    %1515 = vmatpush1.bf16.msra.mxu0 %v1321
    %1516 = vmatprep.subr.bf16.mxu0 0
    %1517 = vmatpush1.bf16.msra.mxu0 %v1322
    %1518 = vmatprep.subr.bf16.mxu0 0
    %1519 = vmatpush1.bf16.msra.mxu0 %v1323
    %1520 = vmatprep.subr.bf16.mxu0 0
    %1521 = vmatpush1.bf16.msra.mxu0 %v1324
    %1522 = vmatprep.subr.bf16.mxu0 0
    %1523 = vmatpush1.bf16.msra.mxu0 %v1325
    %1524 = vmatprep.subr.bf16.mxu0 0
    %1525 = vmatpush1.bf16.msra.mxu0 %v1326
    %1526 = vmatprep.subr.bf16.mxu0 0
    %1527 = vmatpush1.bf16.msra.mxu0 %v1327
    %1528 = vmatprep.subr.bf16.mxu0 0
    %1529 = vmatpush1.bf16.msra.mxu0 %v1328
    %1530 = vmatprep.mubr.bf16.mxu0 %v486
    %1531 = vmatmul.mubr.bf16.gmra.mrb[0].mxu0 %v406
    %v1532 = vpop.f32.mrb[0].mxu0
    %v1533 = vadd.f32 %v1396, %v1532
    %v1534 = vpop.f32.mrb[0].mxu0
    %v1535 = vpop.f32.mrb[0].mxu0
    %v1536 = vadd.f32 %v1399, %v1535
    %v1537 = vpop.f32.mrb[0].mxu0
    %1538 = vmatprep.mubr.bf16.mxu0 %v487
    %1539 = vmatmul.mubr.bf16.gmra.mrb[0].mxu0 %v407
    %v1540 = vpop.f32.mrb[0].mxu0
    %v1541 = vadd.f32 %v1404, %v1540
    %v1542 = vpop.f32.mrb[0].mxu0
    %v1543 = vpop.f32.mrb[0].mxu0
    %v1544 = vadd.f32 %v1407, %v1543
    %v1545 = vpop.f32.mrb[0].mxu0
    %1546 = vmatprep.mubr.bf16.mxu0 %v488
    %1547 = vmatmul.mubr.bf16.gmra.mrb[0].mxu0 %v408
    %v1548 = vpop.f32.mrb[0].mxu0
    %v1549 = vadd.f32 %v1412, %v1548
    %v1550 = vpop.f32.mrb[0].mxu0
    %v1551 = vpop.f32.mrb[0].mxu0
    %v1552 = vadd.f32 %v1415, %v1551
    %v1553 = vpop.f32.mrb[0].mxu0
    %1554 = vmatprep.mubr.bf16.mxu0 %v489
    %1555 = vmatmul.mubr.bf16.gmra.mrb[0].mxu0 %v409
    %v1556 = vpop.f32.mrb[0].mxu0
    %v1557 = vadd.f32 %v1420, %v1556
    %v1558 = vpop.f32.mrb[0].mxu0
    %v1559 = vpop.f32.mrb[0].mxu0
    %v1560 = vadd.f32 %v1423, %v1559
    %v1561 = vpop.f32.mrb[0].mxu0
    %1562 = vmatprep.mubr.bf16.mxu0 %v490
    %1563 = vmatmul.mubr.bf16.gmra.mrb[0].mxu0 %v410
    %v1564 = vpop.f32.mrb[0].mxu0
    %v1565 = vadd.f32 %v1428, %v1564
    %v1566 = vpop.f32.mrb[0].mxu0
    %v1567 = vpop.f32.mrb[0].mxu0
    %v1568 = vadd.f32 %v1431, %v1567
    %v1569 = vpop.f32.mrb[0].mxu0
    %1570 = vmatprep.mubr.bf16.mxu0 %v491
    %1571 = vmatmul.mubr.bf16.gmra.mrb[0].mxu0 %v411
    %v1572 = vpop.f32.mrb[0].mxu0
    %v1573 = vadd.f32 %v1436, %v1572
    %v1574 = vpop.f32.mrb[0].mxu0
    %v1575 = vpop.f32.mrb[0].mxu0
    %v1576 = vadd.f32 %v1439, %v1575
    %v1577 = vpop.f32.mrb[0].mxu0
    %1578 = vmatprep.mubr.bf16.mxu0 %v492
    %1579 = vmatmul.mubr.bf16.gmra.mrb[0].mxu0 %v412
    %v1580 = vpop.f32.mrb[0].mxu0
    %v1581 = vadd.f32 %v1444, %v1580
    %v1582 = vpop.f32.mrb[0].mxu0
    %v1583 = vpop.f32.mrb[0].mxu0
    %v1584 = vadd.f32 %v1447, %v1583
    %v1585 = vpop.f32.mrb[0].mxu0
    %1586 = vmatprep.mubr.bf16.mxu0 %v493
    %1587 = vmatmul.mubr.bf16.gmra.mrb[0].mxu0 %v413
    %v1588 = vpop.f32.mrb[0].mxu0
    %v1589 = vadd.f32 %v1452, %v1588
    %v1590 = vpop.f32.mrb[0].mxu0
    %v1591 = vpop.f32.mrb[0].mxu0
    %v1592 = vadd.f32 %v1455, %v1591
    %v1593 = vpop.f32.mrb[0].mxu0
    %1594 = vmatprep.mubr.bf16.mxu0 %v494
    %1595 = vmatmul.mubr.bf16.gmra.mrb[0].mxu0 %v414
    %v1596 = vpop.f32.mrb[0].mxu0
    %v1597 = vadd.f32 %v1460, %v1596
    %v1598 = vpop.f32.mrb[0].mxu0
    %v1599 = vpop.f32.mrb[0].mxu0
    %v1600 = vadd.f32 %v1463, %v1599
    %v1601 = vpop.f32.mrb[0].mxu0
    %1602 = vmatprep.mubr.bf16.mxu0 %v495
    %1603 = vmatmul.mubr.bf16.gmra.mrb[0].mxu0 %v415
    %v1604 = vpop.f32.mrb[0].mxu0
    %v1605 = vadd.f32 %v1468, %v1604
    %v1606 = vpop.f32.mrb[0].mxu0
    %v1607 = vpop.f32.mrb[0].mxu0
    %v1608 = vadd.f32 %v1471, %v1607
    %v1609 = vpop.f32.mrb[0].mxu0
    %1610 = vmatprep.mubr.bf16.mxu0 %v496
    %1611 = vmatmul.mubr.bf16.gmra.mrb[0].mxu0 %v416
    %v1612 = vpop.f32.mrb[0].mxu0
    %v1613 = vadd.f32 %v1476, %v1612
    %v1614 = vpop.f32.mrb[0].mxu0
    %v1615 = vpop.f32.mrb[0].mxu0
    %v1616 = vadd.f32 %v1479, %v1615
    %v1617 = vpop.f32.mrb[0].mxu0
    %1618 = vmatprep.mubr.bf16.mxu0 %v497
    %1619 = vmatmul.mubr.bf16.gmra.mrb[0].mxu0 %v417
    %v1620 = vpop.f32.mrb[0].mxu0
    %v1621 = vadd.f32 %v1484, %v1620
    %v1622 = vpop.f32.mrb[0].mxu0
    %v1623 = vpop.f32.mrb[0].mxu0
    %v1624 = vadd.f32 %v1487, %v1623
    %v1625 = vpop.f32.mrb[0].mxu0
    %1626 = vmatprep.mubr.bf16.mxu0 %v498
    %1627 = vmatmul.mubr.bf16.gmra.mrb[0].mxu0 %v418
    %v1628 = vpop.f32.mrb[0].mxu0
    %v1629 = vadd.f32 %v1492, %v1628
    %v1630 = vpop.f32.mrb[0].mxu0
    %v1631 = vpop.f32.mrb[0].mxu0
    %v1632 = vadd.f32 %v1495, %v1631
    %v1633 = vpop.f32.mrb[0].mxu0
    %1634 = vdwg.mxu0
    %v1635 = vmax.f32 %v1533, %v1549
    %v1636 = vmax.f32 %v1541, %v1557
    %v1637 = vmax.f32 %v1635, %v1565
    %v1638 = vmax.f32 %v1636, %v1573
    %v1639 = vmax.f32 %v1637, %v1581
    %v1640 = vmax.f32 %v1638, %v1589
    %v1641 = vmax.f32 %v1639, %v1597
    %v1642 = vmax.f32 %v1640, %v1605
    %v1643 = vmax.f32 %v1641, %v1613
    %v1644 = vmax.f32 %v1642, %v1621
    %v1645 = vmax.f32 %v1643, %v1629
    %v1646 = vmax.f32 %v1645, %v1644
    %v1647 = vmax.f32 %v1536, %v1552
    %v1648 = vmax.f32 %v1544, %v1560
    %v1649 = vmax.f32 %v1647, %v1568
    %v1650 = vmax.f32 %v1648, %v1576
    %v1651 = vmax.f32 %v1649, %v1584
    %v1652 = vmax.f32 %v1650, %v1592
    %v1653 = vmax.f32 %v1651, %v1600
    %v1654 = vmax.f32 %v1652, %v1608
    %v1655 = vmax.f32 %v1653, %v1616
    %v1656 = vmax.f32 %v1654, %v1624
    %v1657 = vmax.f32 %v1655, %v1632
    %v1658 = vmax.f32 %v1657, %v1656
    %v1659 = vld [vmem:[%s2 + $0x1] sm:$0x1]
    %v1661 = vlaneseq
    %v1662 = vshrl.u32 %v1661, 7
    %v1663 = vsub.s32 0, %v1662
    %v1664 = vrot.slane %v1659, %v1663
    %v1666 = vadd.f32 %v1646, %v1664
    %v1667 = vadd.f32 %v1658, %v1664
    %v1668 = vmax.f32 %v1666, 0.0
    %v1669 = vmax.f32 %v1667, 0.0
    %1670 = vst [vmem:[#allocation7 + $0x8] sm:$0xff] %v1668
    %1671 = vst [vmem:[#allocation7 + $0x20] sm:$0xff] %v1669
    %v1672 = vld [vmem:[#allocation5 + $0x8] sm:$0xf]
    %v1673 = vld [vmem:[#allocation5 + $0x14] sm:$0xf]
    %v1674 = vld [vmem:[#allocation5 + $0x20] sm:$0xf]
    %v1675 = vld [vmem:[#allocation5 + $0x2c] sm:$0xf]
    %v1676 = vld [vmem:[#allocation5 + $0x38] sm:$0xf]
    %v1677 = vld [vmem:[#allocation5 + $0x44] sm:$0xf]
    %v1678 = vld [vmem:[#allocation5 + $0x50] sm:$0xf]
    %v1679 = vld [vmem:[#allocation5 + $0x5c] sm:$0xf]
    %v1680 = vld [vmem:[#allocation5 + $0x68] sm:$0xf]
    %v1681 = vld [vmem:[#allocation5 + $0x74] sm:$0xf]
    %v1682 = vld [vmem:[#allocation5 + $0x80] sm:$0xf]
    %v1683 = vld [vmem:[#allocation5 + $0x8c] sm:$0xf]
    %v1684 = vld [vmem:[#allocation5 + $0x98] sm:$0xf]
    %v1685 = vld [vmem:[#allocation5 + $0xa4] sm:$0xf]
    %v1686 = vld [vmem:[#allocation5 + $0xb0] sm:$0xf]
    %v1687 = vld [vmem:[#allocation5 + $0xbc] sm:$0xf]
    %v1688 = vld [vmem:[#allocation5 + $0xc8] sm:$0xf]
    %v1689 = vld [vmem:[#allocation5 + $0xd4] sm:$0xf]
    %v1690 = vld [vmem:[#allocation5 + $0xe0] sm:$0xf]
    %v1691 = vld [vmem:[#allocation5 + $0xec] sm:$0xf]
    %v1692 = vld [vmem:[#allocation5 + $0xf8] sm:$0xf]
    %v1693 = vld [vmem:[#allocation5 + $0x104] sm:$0xf]
    %v1694 = vld [vmem:[#allocation5 + $0x110] sm:$0xf]
    %v1695 = vld [vmem:[#allocation5 + $0x11c] sm:$0xf]
    %v1696 = vld [vmem:[#allocation5 + $0x128] sm:$0xf]
    %v1697 = vld [vmem:[#allocation5 + $0x134] sm:$0xf]
    %v1698 = vld [vmem:[#allocation5 + $0x140] sm:$0xf]
    %v1699 = vld [vmem:[#allocation5 + $0x14c] sm:$0xf]
    %v1700 = vld [vmem:[#allocation5 + $0x158] sm:$0xf]
    %v1701 = vld [vmem:[#allocation5 + $0x164] sm:$0xf]
    %v1702 = vld [vmem:[#allocation5 + $0x170] sm:$0xf]
    %v1703 = vld [vmem:[#allocation5 + $0x17c] sm:$0xf]
    %v1704 = vld [vmem:[#allocation5 + $0x188] sm:$0xf]
    %v1705 = vld [vmem:[#allocation5 + $0x194] sm:$0xf]
    %v1706 = vld [vmem:[#allocation5 + $0x1a0] sm:$0xf]
    %v1707 = vld [vmem:[#allocation5 + $0x1ac] sm:$0xf]
    %v1708 = vld [vmem:[#allocation5 + $0x1b8] sm:$0xf]
    %v1709 = vld [vmem:[#allocation5 + $0x1c4] sm:$0xf]
    %v1710 = vld [vmem:[#allocation5 + $0x1d0] sm:$0xf]
    %v1711 = vld [vmem:[#allocation5 + $0x1dc] sm:$0xf]
    %v1712 = vld [vmem:[#allocation5 + $0x1e8] sm:$0xf]
    %v1713 = vld [vmem:[#allocation5 + $0x1f4] sm:$0xf]
    %v1714 = vld [vmem:[#allocation5 + $0x200] sm:$0xf]
    %v1715 = vld [vmem:[#allocation5 + $0x20c] sm:$0xf]
    %v1716 = vld [vmem:[#allocation5 + $0x218] sm:$0xf]
    %v1717 = vld [vmem:[#allocation5 + $0x224] sm:$0xf]
    %v1718 = vld [vmem:[#allocation5 + $0x230] sm:$0xf]
    %v1719 = vld [vmem:[#allocation5 + $0x23c] sm:$0xf]
    %v1720 = vld [vmem:[#allocation5 + $0x248] sm:$0xf]
    %v1721 = vld [vmem:[#allocation5 + $0x254] sm:$0xf]
    %v1722 = vld [vmem:[#allocation5 + $0x260] sm:$0xf]
    %v1723 = vld [vmem:[#allocation5 + $0x26c] sm:$0xf]
    %v1724 = vld [vmem:[#allocation5 + $0x278] sm:$0xf]
    %v1725 = vld [vmem:[#allocation5 + $0x284] sm:$0xf]
    %v1726 = vld [vmem:[#allocation5 + $0x290] sm:$0xf]
    %v1727 = vld [vmem:[#allocation5 + $0x29c] sm:$0xf]
    %v1728 = vld [vmem:[#allocation5 + $0x2a8] sm:$0xf]
    %v1729 = vld [vmem:[#allocation5 + $0x2b4] sm:$0xf]
    %v1730 = vld [vmem:[#allocation5 + $0x2c0] sm:$0xf]
    %v1731 = vld [vmem:[#allocation5 + $0x2cc] sm:$0xf]
    %v1732 = vld [vmem:[#allocation5 + $0x2d8] sm:$0xf]
    %v1733 = vld [vmem:[#allocation5 + $0x2e4] sm:$0xf]
    %v1734 = vld [vmem:[#allocation5 + $0x2f0] sm:$0xf]
    %v1735 = vld [vmem:[#allocation5 + $0x2fc] sm:$0xf]
    %v1736 = vld [vmem:[#allocation5 + $0x308] sm:$0xf]
    %v1737 = vld [vmem:[#allocation5 + $0x314] sm:$0xf]
    %v1738 = vld [vmem:[#allocation5 + $0x320] sm:$0xf]
    %v1739 = vld [vmem:[#allocation5 + $0x32c] sm:$0xf]
    %v1740 = vld [vmem:[#allocation5 + $0x338] sm:$0xf]
    %v1741 = vld [vmem:[#allocation5 + $0x344] sm:$0xf]
    %v1742 = vld [vmem:[#allocation5 + $0x350] sm:$0xf]
    %v1743 = vld [vmem:[#allocation5 + $0x35c] sm:$0xf]
    %v1744 = vld [vmem:[#allocation5 + $0x368] sm:$0xf]
    %v1745 = vld [vmem:[#allocation5 + $0x374] sm:$0xf]
    %v1746 = vld [vmem:[#allocation5 + $0x380] sm:$0xf]
    %v1747 = vld [vmem:[#allocation5 + $0x38c] sm:$0xf]
    %v1748 = vld [vmem:[#allocation5 + $0x398] sm:$0xf]
    %v1749 = vld [vmem:[#allocation5 + $0x3a4] sm:$0xf]
    %v1750 = vld [vmem:[#allocation5 + $0x3b0] sm:$0xf]
    %v1751 = vld [vmem:[#allocation5 + $0x3bc] sm:$0xf]
    %v1832 = vunpack.c.l.b16 %v1672
    %v1833 = vunpack.c.l.b16 %v1673
    %v1834 = vunpack.c.l.b16 %v1674
    %v1835 = vunpack.c.l.b16 %v1675
    %v1836 = vunpack.c.l.b16 %v1676
    %v1837 = vunpack.c.l.b16 %v1677
    %v1838 = vunpack.c.l.b16 %v1678
    %v1839 = vunpack.c.l.b16 %v1679
    %v1840 = vunpack.c.l.b16 %v1680
    %v1841 = vunpack.c.l.b16 %v1681
    %v1842 = vunpack.c.l.b16 %v1682
    %v1843 = vunpack.c.l.b16 %v1683
    %v1844 = vunpack.c.l.b16 %v1684
    %v1845 = vunpack.c.l.b16 %v1685
    %v1846 = vunpack.c.l.b16 %v1686
    %v1847 = vunpack.c.l.b16 %v1687
    %v1848 = vunpack.c.l.b16 %v1688
    %v1849 = vunpack.c.l.b16 %v1689
    %v1850 = vunpack.c.l.b16 %v1690
    %v1851 = vunpack.c.l.b16 %v1691
    %v1852 = vunpack.c.l.b16 %v1692
    %v1853 = vunpack.c.l.b16 %v1693
    %v1854 = vunpack.c.l.b16 %v1694
    %v1855 = vunpack.c.l.b16 %v1695
    %v1856 = vunpack.c.l.b16 %v1696
    %v1857 = vunpack.c.l.b16 %v1697
    %v1858 = vunpack.c.l.b16 %v1698
    %v1859 = vunpack.c.l.b16 %v1699
    %v1860 = vunpack.c.l.b16 %v1700
    %v1861 = vunpack.c.l.b16 %v1701
    %v1862 = vunpack.c.l.b16 %v1702
    %v1863 = vunpack.c.l.b16 %v1703
    %v1864 = vunpack.c.l.b16 %v1704
    %v1865 = vunpack.c.l.b16 %v1705
    %v1866 = vunpack.c.l.b16 %v1706
    %v1867 = vunpack.c.l.b16 %v1707
    %v1868 = vunpack.c.l.b16 %v1708
    %v1869 = vunpack.c.l.b16 %v1709
    %v1870 = vunpack.c.l.b16 %v1710
    %v1871 = vunpack.c.l.b16 %v1711
    %v1872 = vunpack.c.l.b16 %v1712
    %v1873 = vunpack.c.l.b16 %v1713
    %v1874 = vunpack.c.l.b16 %v1714
    %v1875 = vunpack.c.l.b16 %v1715
    %v1876 = vunpack.c.l.b16 %v1716
    %v1877 = vunpack.c.l.b16 %v1717
    %v1878 = vunpack.c.l.b16 %v1718
    %v1879 = vunpack.c.l.b16 %v1719
    %v1880 = vunpack.c.l.b16 %v1720
    %v1881 = vunpack.c.l.b16 %v1721
    %v1882 = vunpack.c.l.b16 %v1722
    %v1883 = vunpack.c.l.b16 %v1723
    %v1884 = vunpack.c.l.b16 %v1724
    %v1885 = vunpack.c.l.b16 %v1725
    %v1886 = vunpack.c.l.b16 %v1726
    %v1887 = vunpack.c.l.b16 %v1727
    %v1888 = vunpack.c.l.b16 %v1728
    %v1889 = vunpack.c.l.b16 %v1729
    %v1890 = vunpack.c.l.b16 %v1730
    %v1891 = vunpack.c.l.b16 %v1731
    %v1892 = vunpack.c.l.b16 %v1732
    %v1893 = vunpack.c.l.b16 %v1733
    %v1894 = vunpack.c.l.b16 %v1734
    %v1895 = vunpack.c.l.b16 %v1735
    %v1896 = vunpack.c.l.b16 %v1736
    %v1897 = vunpack.c.l.b16 %v1737
    %v1898 = vunpack.c.l.b16 %v1738
    %v1899 = vunpack.c.l.b16 %v1739
    %v1900 = vunpack.c.l.b16 %v1740
    %v1901 = vunpack.c.l.b16 %v1741
    %v1902 = vunpack.c.l.b16 %v1742
    %v1903 = vunpack.c.l.b16 %v1743
    %v1904 = vunpack.c.l.b16 %v1744
    %v1905 = vunpack.c.l.b16 %v1745
    %v1906 = vunpack.c.l.b16 %v1746
    %v1907 = vunpack.c.l.b16 %v1747
    %v1908 = vunpack.c.l.b16 %v1748
    %v1909 = vunpack.c.l.b16 %v1749
    %v1910 = vunpack.c.l.b16 %v1750
    %v1911 = vunpack.c.l.b16 %v1751
    %v1912 = vpack.c.b16 %v1833, %v1832
    %v1913 = vpack.c.b16 %v1835, %v1834
    %v1914 = vpack.c.b16 %v1837, %v1836
    %v1915 = vpack.c.b16 %v1839, %v1838
    %v1916 = vpack.c.b16 %v1841, %v1840
    %v1917 = vpack.c.b16 %v1843, %v1842
    %v1918 = vpack.c.b16 %v1845, %v1844
    %v1919 = vpack.c.b16 %v1847, %v1846
    %v1920 = vpack.c.b16 %v1849, %v1848
    %v1921 = vpack.c.b16 %v1851, %v1850
    %v1922 = vpack.c.b16 %v1853, %v1852
    %v1923 = vpack.c.b16 %v1855, %v1854
    %v1924 = vpack.c.b16 %v1857, %v1856
    %v1925 = vpack.c.b16 %v1859, %v1858
    %v1926 = vpack.c.b16 %v1861, %v1860
    %v1927 = vpack.c.b16 %v1863, %v1862
    %v1928 = vpack.c.b16 %v1865, %v1864
    %v1929 = vpack.c.b16 %v1867, %v1866
    %v1930 = vpack.c.b16 %v1869, %v1868
    %v1931 = vpack.c.b16 %v1871, %v1870
    %v1932 = vpack.c.b16 %v1873, %v1872
    %v1933 = vpack.c.b16 %v1875, %v1874
    %v1934 = vpack.c.b16 %v1877, %v1876
    %v1935 = vpack.c.b16 %v1879, %v1878
    %v1936 = vpack.c.b16 %v1881, %v1880
    %v1937 = vpack.c.b16 %v1883, %v1882
    %v1938 = vpack.c.b16 %v1885, %v1884
    %v1939 = vpack.c.b16 %v1887, %v1886
    %v1940 = vpack.c.b16 %v1889, %v1888
    %v1941 = vpack.c.b16 %v1891, %v1890
    %v1942 = vpack.c.b16 %v1893, %v1892
    %v1943 = vpack.c.b16 %v1895, %v1894
    %v1944 = vpack.c.b16 %v1897, %v1896
    %v1945 = vpack.c.b16 %v1899, %v1898
    %v1946 = vpack.c.b16 %v1901, %v1900
    %v1947 = vpack.c.b16 %v1903, %v1902
    %v1948 = vpack.c.b16 %v1905, %v1904
    %v1949 = vpack.c.b16 %v1907, %v1906
    %v1950 = vpack.c.b16 %v1909, %v1908
    %v1951 = vpack.c.b16 %v1911, %v1910
    %1992 = vmatprep.subr.bf16.mxu0 0
    %1993 = vmatpush1.bf16.msra.mxu0 %v1912
    %1994 = vmatprep.subr.bf16.mxu0 0
    %1995 = vmatpush1.bf16.msra.mxu0 %v1913
    %1996 = vmatprep.subr.bf16.mxu0 0
    %1997 = vmatpush1.bf16.msra.mxu0 %v1914
    %1998 = vmatprep.subr.bf16.mxu0 0
    %1999 = vmatpush1.bf16.msra.mxu0 %v1915
    %2000 = vmatprep.subr.bf16.mxu0 0
    %2001 = vmatpush1.bf16.msra.mxu0 %v1916
    %2002 = vmatprep.subr.bf16.mxu0 0
    %2003 = vmatpush1.bf16.msra.mxu0 %v1917
    %2004 = vmatprep.subr.bf16.mxu0 0
    %2005 = vmatpush1.bf16.msra.mxu0 %v1918
    %2006 = vmatprep.subr.bf16.mxu0 0
    %2007 = vmatpush1.bf16.msra.mxu0 %v1919
    %2008 = vmatprep.subr.bf16.mxu0 0
    %2009 = vmatpush1.bf16.msra.mxu0 %v1920
    %2010 = vmatprep.subr.bf16.mxu0 0
    %2011 = vmatpush1.bf16.msra.mxu0 %v1921
    %2012 = vmatprep.subr.bf16.mxu0 0
    %2013 = vmatpush1.bf16.msra.mxu0 %v1922
    %2014 = vmatprep.subr.bf16.mxu0 0
    %2015 = vmatpush1.bf16.msra.mxu0 %v1923
    %2016 = vmatprep.subr.bf16.mxu0 0
    %2017 = vmatpush1.bf16.msra.mxu0 %v1924
    %2018 = vmatprep.subr.bf16.mxu0 0
    %2019 = vmatpush1.bf16.msra.mxu0 %v1925
    %2020 = vmatprep.subr.bf16.mxu0 0
    %2021 = vmatpush1.bf16.msra.mxu0 %v1926
    %2022 = vmatprep.subr.bf16.mxu0 0
    %2023 = vmatpush1.bf16.msra.mxu0 %v1927
    %2024 = vmatprep.mubr.bf16.mxu0 %v322
    %2025 = vmatmul.mubr.bf16.gmra.mrb[0].mxu0 %v238
    %v2026 = vpop.f32.mrb[0].mxu0
    %v2027 = vadd.f32 0.0, %v2026
    %v2028 = vpop.f32.mrb[0].mxu0
    %v2029 = vpop.f32.mrb[0].mxu0
    %v2030 = vadd.f32 0.0, %v2029
    %v2031 = vpop.f32.mrb[0].mxu0
    %2032 = vmatprep.mubr.bf16.mxu0 %v323
    %2033 = vmatmul.mubr.bf16.gmra.mrb[0].mxu0 %v239
    %v2034 = vpop.f32.mrb[0].mxu0
    %v2035 = vadd.f32 0.0, %v2034
    %v2036 = vpop.f32.mrb[0].mxu0
    %v2037 = vpop.f32.mrb[0].mxu0
    %v2038 = vadd.f32 0.0, %v2037
    %v2039 = vpop.f32.mrb[0].mxu0
    %2040 = vmatprep.mubr.bf16.mxu0 %v324
    %2041 = vmatmul.mubr.bf16.gmra.mrb[0].mxu0 %v240
    %v2042 = vpop.f32.mrb[0].mxu0
    %v2043 = vadd.f32 0.0, %v2042
    %v2044 = vpop.f32.mrb[0].mxu0
    %v2045 = vpop.f32.mrb[0].mxu0
    %v2046 = vadd.f32 0.0, %v2045
    %v2047 = vpop.f32.mrb[0].mxu0
    %2048 = vmatprep.mubr.bf16.mxu0 %v325
    %2049 = vmatmul.mubr.bf16.gmra.mrb[0].mxu0 %v241
    %v2050 = vpop.f32.mrb[0].mxu0
    %v2051 = vadd.f32 0.0, %v2050
    %v2052 = vpop.f32.mrb[0].mxu0
    %v2053 = vpop.f32.mrb[0].mxu0
    %v2054 = vadd.f32 0.0, %v2053
    %v2055 = vpop.f32.mrb[0].mxu0
    %2056 = vmatprep.mubr.bf16.mxu0 %v326
    %2057 = vmatmul.mubr.bf16.gmra.mrb[0].mxu0 %v242
    %v2058 = vpop.f32.mrb[0].mxu0
    %v2059 = vadd.f32 0.0, %v2058
    %v2060 = vpop.f32.mrb[0].mxu0
    %v2061 = vpop.f32.mrb[0].mxu0
    %v2062 = vadd.f32 0.0, %v2061
    %v2063 = vpop.f32.mrb[0].mxu0
    %2064 = vmatprep.mubr.bf16.mxu0 %v327
    %2065 = vmatmul.mubr.bf16.gmra.mrb[0].mxu0 %v243
    %v2066 = vpop.f32.mrb[0].mxu0
    %v2067 = vadd.f32 0.0, %v2066
    %v2068 = vpop.f32.mrb[0].mxu0
    %v2069 = vpop.f32.mrb[0].mxu0
    %v2070 = vadd.f32 0.0, %v2069
    %v2071 = vpop.f32.mrb[0].mxu0
    %2072 = vmatprep.mubr.bf16.mxu0 %v328
    %2073 = vmatmul.mubr.bf16.gmra.mrb[0].mxu0 %v244
    %v2074 = vpop.f32.mrb[0].mxu0
    %v2075 = vadd.f32 0.0, %v2074
    %v2076 = vpop.f32.mrb[0].mxu0
    %v2077 = vpop.f32.mrb[0].mxu0
    %v2078 = vadd.f32 0.0, %v2077
    %v2079 = vpop.f32.mrb[0].mxu0
    %2080 = vmatprep.mubr.bf16.mxu0 %v329
    %2081 = vmatmul.mubr.bf16.gmra.mrb[0].mxu0 %v245
    %v2082 = vpop.f32.mrb[0].mxu0
    %v2083 = vadd.f32 0.0, %v2082
    %v2084 = vpop.f32.mrb[0].mxu0
    %v2085 = vpop.f32.mrb[0].mxu0
    %v2086 = vadd.f32 0.0, %v2085
    %v2087 = vpop.f32.mrb[0].mxu0
    %2088 = vmatprep.mubr.bf16.mxu0 %v330
    %2089 = vmatmul.mubr.bf16.gmra.mrb[0].mxu0 %v246
    %v2090 = vpop.f32.mrb[0].mxu0
    %v2091 = vadd.f32 0.0, %v2090
    %v2092 = vpop.f32.mrb[0].mxu0
    %v2093 = vpop.f32.mrb[0].mxu0
    %v2094 = vadd.f32 0.0, %v2093
    %v2095 = vpop.f32.mrb[0].mxu0
    %2096 = vmatprep.mubr.bf16.mxu0 %v331
    %2097 = vmatmul.mubr.bf16.gmra.mrb[0].mxu0 %v247
    %v2098 = vpop.f32.mrb[0].mxu0
    %v2099 = vadd.f32 0.0, %v2098
    %v2100 = vpop.f32.mrb[0].mxu0
    %v2101 = vpop.f32.mrb[0].mxu0
    %v2102 = vadd.f32 0.0, %v2101
    %v2103 = vpop.f32.mrb[0].mxu0
    %2104 = vmatprep.mubr.bf16.mxu0 %v332
    %2105 = vmatmul.mubr.bf16.gmra.mrb[0].mxu0 %v248
    %v2106 = vpop.f32.mrb[0].mxu0
    %v2107 = vadd.f32 0.0, %v2106
    %v2108 = vpop.f32.mrb[0].mxu0
    %v2109 = vpop.f32.mrb[0].mxu0
    %v2110 = vadd.f32 0.0, %v2109
    %v2111 = vpop.f32.mrb[0].mxu0
    %2112 = vmatprep.mubr.bf16.mxu0 %v333
    %2113 = vmatmul.mubr.bf16.gmra.mrb[0].mxu0 %v249
    %v2114 = vpop.f32.mrb[0].mxu0
    %v2115 = vadd.f32 0.0, %v2114
    %v2116 = vpop.f32.mrb[0].mxu0
    %v2117 = vpop.f32.mrb[0].mxu0
    %v2118 = vadd.f32 0.0, %v2117
    %v2119 = vpop.f32.mrb[0].mxu0
    %2120 = vdwg.mxu0
    %2121 = vmatprep.subr.bf16.mxu0 0
    %2122 = vmatpush1.bf16.msra.mxu0 %v1928
    %2123 = vmatprep.subr.bf16.mxu0 0
    %2124 = vmatpush1.bf16.msra.mxu0 %v1929
    %2125 = vmatprep.subr.bf16.mxu0 0
    %2126 = vmatpush1.bf16.msra.mxu0 %v1930
    %2127 = vmatprep.subr.bf16.mxu0 0
    %2128 = vmatpush1.bf16.msra.mxu0 %v1931
    %2129 = vmatprep.subr.bf16.mxu0 0
    %2130 = vmatpush1.bf16.msra.mxu0 %v1932
    %2131 = vmatprep.subr.bf16.mxu0 0
    %2132 = vmatpush1.bf16.msra.mxu0 %v1933
    %2133 = vmatprep.subr.bf16.mxu0 0
    %2134 = vmatpush1.bf16.msra.mxu0 %v1934
    %2135 = vmatprep.subr.bf16.mxu0 0
    %2136 = vmatpush1.bf16.msra.mxu0 %v1935
    %2137 = vmatprep.subr.bf16.mxu0 0
    %2138 = vmatpush1.bf16.msra.mxu0 %v1936
    %2139 = vmatprep.subr.bf16.mxu0 0
    %2140 = vmatpush1.bf16.msra.mxu0 %v1937
    %2141 = vmatprep.subr.bf16.mxu0 0
    %2142 = vmatpush1.bf16.msra.mxu0 %v1938
    %2143 = vmatprep.subr.bf16.mxu0 0
    %2144 = vmatpush1.bf16.msra.mxu0 %v1939
    %2145 = vmatprep.subr.bf16.mxu0 0
    %2146 = vmatpush1.bf16.msra.mxu0 %v1940
    %2147 = vmatprep.subr.bf16.mxu0 0
    %2148 = vmatpush1.bf16.msra.mxu0 %v1941
    %2149 = vmatprep.subr.bf16.mxu0 0
    %2150 = vmatpush1.bf16.msra.mxu0 %v1942
    %2151 = vmatprep.subr.bf16.mxu0 0
    %2152 = vmatpush1.bf16.msra.mxu0 %v1943
    %2153 = vmatprep.mubr.bf16.mxu0 %v486
    %2154 = vmatmul.mubr.bf16.gmra.mrb[0].mxu0 %v406
    %v2155 = vpop.f32.mrb[0].mxu0
    %v2156 = vadd.f32 %v2027, %v2155
    %v2157 = vpop.f32.mrb[0].mxu0
    %v2158 = vpop.f32.mrb[0].mxu0
    %v2159 = vadd.f32 %v2030, %v2158
    %v2160 = vpop.f32.mrb[0].mxu0
    %2161 = vmatprep.mubr.bf16.mxu0 %v487
    %2162 = vmatmul.mubr.bf16.gmra.mrb[0].mxu0 %v407
    %v2163 = vpop.f32.mrb[0].mxu0
    %v2164 = vadd.f32 %v2035, %v2163
    %v2165 = vpop.f32.mrb[0].mxu0
    %v2166 = vpop.f32.mrb[0].mxu0
    %v2167 = vadd.f32 %v2038, %v2166
    %v2168 = vpop.f32.mrb[0].mxu0
    %2169 = vmatprep.mubr.bf16.mxu0 %v488
    %2170 = vmatmul.mubr.bf16.gmra.mrb[0].mxu0 %v408
    %v2171 = vpop.f32.mrb[0].mxu0
    %v2172 = vadd.f32 %v2043, %v2171
    %v2173 = vpop.f32.mrb[0].mxu0
    %v2174 = vpop.f32.mrb[0].mxu0
    %v2175 = vadd.f32 %v2046, %v2174
    %v2176 = vpop.f32.mrb[0].mxu0
    %2177 = vmatprep.mubr.bf16.mxu0 %v489
    %2178 = vmatmul.mubr.bf16.gmra.mrb[0].mxu0 %v409
    %v2179 = vpop.f32.mrb[0].mxu0
    %v2180 = vadd.f32 %v2051, %v2179
    %v2181 = vpop.f32.mrb[0].mxu0
    %v2182 = vpop.f32.mrb[0].mxu0
    %v2183 = vadd.f32 %v2054, %v2182
    %v2184 = vpop.f32.mrb[0].mxu0
    %2185 = vmatprep.mubr.bf16.mxu0 %v490
    %2186 = vmatmul.mubr.bf16.gmra.mrb[0].mxu0 %v410
    %v2187 = vpop.f32.mrb[0].mxu0
    %v2188 = vadd.f32 %v2059, %v2187
    %v2189 = vpop.f32.mrb[0].mxu0
    %v2190 = vpop.f32.mrb[0].mxu0
    %v2191 = vadd.f32 %v2062, %v2190
    %v2192 = vpop.f32.mrb[0].mxu0
    %2193 = vmatprep.mubr.bf16.mxu0 %v491
    %2194 = vmatmul.mubr.bf16.gmra.mrb[0].mxu0 %v411
    %v2195 = vpop.f32.mrb[0].mxu0
    %v2196 = vadd.f32 %v2067, %v2195
    %v2197 = vpop.f32.mrb[0].mxu0
    %v2198 = vpop.f32.mrb[0].mxu0
    %v2199 = vadd.f32 %v2070, %v2198
    %v2200 = vpop.f32.mrb[0].mxu0
    %2201 = vmatprep.mubr.bf16.mxu0 %v492
    %2202 = vmatmul.mubr.bf16.gmra.mrb[0].mxu0 %v412
    %v2203 = vpop.f32.mrb[0].mxu0
    %v2204 = vadd.f32 %v2075, %v2203
    %v2205 = vpop.f32.mrb[0].mxu0
    %v2206 = vpop.f32.mrb[0].mxu0
    %v2207 = vadd.f32 %v2078, %v2206
    %v2208 = vpop.f32.mrb[0].mxu0
    %2209 = vmatprep.mubr.bf16.mxu0 %v493
    %2210 = vmatmul.mubr.bf16.gmra.mrb[0].mxu0 %v413
    %v2211 = vpop.f32.mrb[0].mxu0
    %v2212 = vadd.f32 %v2083, %v2211
    %v2213 = vpop.f32.mrb[0].mxu0
    %v2214 = vpop.f32.mrb[0].mxu0
    %v2215 = vadd.f32 %v2086, %v2214
    %v2216 = vpop.f32.mrb[0].mxu0
    %2217 = vmatprep.mubr.bf16.mxu0 %v494
    %2218 = vmatmul.mubr.bf16.gmra.mrb[0].mxu0 %v414
    %v2219 = vpop.f32.mrb[0].mxu0
    %v2220 = vadd.f32 %v2091, %v2219
    %v2221 = vpop.f32.mrb[0].mxu0
    %v2222 = vpop.f32.mrb[0].mxu0
    %v2223 = vadd.f32 %v2094, %v2222
    %v2224 = vpop.f32.mrb[0].mxu0
    %2225 = vmatprep.mubr.bf16.mxu0 %v495
    %2226 = vmatmul.mubr.bf16.gmra.mrb[0].mxu0 %v415
    %v2227 = vpop.f32.mrb[0].mxu0
    %v2228 = vadd.f32 %v2099, %v2227
    %v2229 = vpop.f32.mrb[0].mxu0
    %v2230 = vpop.f32.mrb[0].mxu0
    %v2231 = vadd.f32 %v2102, %v2230
    %v2232 = vpop.f32.mrb[0].mxu0
    %2233 = vmatprep.mubr.bf16.mxu0 %v496
    %2234 = vmatmul.mubr.bf16.gmra.mrb[0].mxu0 %v416
    %v2235 = vpop.f32.mrb[0].mxu0
    %v2236 = vadd.f32 %v2107, %v2235
    %v2237 = vpop.f32.mrb[0].mxu0
    %v2238 = vpop.f32.mrb[0].mxu0
    %v2239 = vadd.f32 %v2110, %v2238
    %v2240 = vpop.f32.mrb[0].mxu0
    %2241 = vmatprep.mubr.bf16.mxu0 %v497
    %2242 = vmatmul.mubr.bf16.gmra.mrb[0].mxu0 %v417
    %v2243 = vpop.f32.mrb[0].mxu0
    %v2244 = vadd.f32 %v2115, %v2243
    %v2245 = vpop.f32.mrb[0].mxu0
    %v2246 = vpop.f32.mrb[0].mxu0
    %v2247 = vadd.f32 %v2118, %v2246
    %v2248 = vpop.f32.mrb[0].mxu0
    %2249 = vdwg.mxu0
    %2250 = vmatprep.subr.bf16.mxu0 0
    %2251 = vmatpush1.bf16.msra.mxu0 %v1944
    %2252 = vmatprep.subr.bf16.mxu0 0
    %2253 = vmatpush1.bf16.msra.mxu0 %v1945
    %2254 = vmatprep.subr.bf16.mxu0 0
    %2255 = vmatpush1.bf16.msra.mxu0 %v1946
    %2256 = vmatprep.subr.bf16.mxu0 0
    %2257 = vmatpush1.bf16.msra.mxu0 %v1947
    %2258 = vmatprep.subr.bf16.mxu0 0
    %2259 = vmatpush1.bf16.msra.mxu0 %v1948
    %2260 = vmatprep.subr.bf16.mxu0 0
    %2261 = vmatpush1.bf16.msra.mxu0 %v1949
    %2262 = vmatprep.subr.bf16.mxu0 0
    %2263 = vmatpush1.bf16.msra.mxu0 %v1950
    %2264 = vmatprep.subr.bf16.mxu0 0
    %2265 = vmatpush1.bf16.msra.mxu0 %v1951
    %2266 = vmatprep.subr.bf16.mxu0 0
    %2267 = vmatpush1.bf16.msra.mxu0 0
    %2268 = vmatprep.subr.bf16.mxu0 0
    %2269 = vmatpush1.bf16.msra.mxu0 0
    %2270 = vmatprep.subr.bf16.mxu0 0
    %2271 = vmatpush1.bf16.msra.mxu0 0
    %2272 = vmatprep.subr.bf16.mxu0 0
    %2273 = vmatpush1.bf16.msra.mxu0 0
    %2274 = vmatprep.subr.bf16.mxu0 0
    %2275 = vmatpush1.bf16.msra.mxu0 0
    %2276 = vmatprep.subr.bf16.mxu0 0
    %2277 = vmatpush1.bf16.msra.mxu0 0
    %2278 = vmatprep.subr.bf16.mxu0 0
    %2279 = vmatpush1.bf16.msra.mxu0 0
    %2280 = vmatprep.subr.bf16.mxu0 0
    %2281 = vmatpush1.bf16.msra.mxu0 0
    %2282 = vmatprep.mubr.bf16.mxu0 0
    %2283 = vmatmul.mubr.bf16.gmra.mrb[0].mxu0 %v560
    %v2284 = vpop.f32.mrb[0].mxu0
    %v2285 = vadd.f32 %v2156, %v2284
    %v2286 = vpop.f32.mrb[0].mxu0
    %v2287 = vpop.f32.mrb[0].mxu0
    %v2288 = vadd.f32 %v2159, %v2287
    %v2289 = vpop.f32.mrb[0].mxu0
    %2290 = vmatprep.mubr.bf16.mxu0 0
    %2291 = vmatmul.mubr.bf16.gmra.mrb[0].mxu0 %v561
    %v2292 = vpop.f32.mrb[0].mxu0
    %v2293 = vadd.f32 %v2164, %v2292
    %v2294 = vpop.f32.mrb[0].mxu0
    %v2295 = vpop.f32.mrb[0].mxu0
    %v2296 = vadd.f32 %v2167, %v2295
    %v2297 = vpop.f32.mrb[0].mxu0
    %2298 = vmatprep.mubr.bf16.mxu0 0
    %2299 = vmatmul.mubr.bf16.gmra.mrb[0].mxu0 %v562
    %v2300 = vpop.f32.mrb[0].mxu0
    %v2301 = vadd.f32 %v2172, %v2300
    %v2302 = vpop.f32.mrb[0].mxu0
    %v2303 = vpop.f32.mrb[0].mxu0
    %v2304 = vadd.f32 %v2175, %v2303
    %v2305 = vpop.f32.mrb[0].mxu0
    %2306 = vmatprep.mubr.bf16.mxu0 0
    %2307 = vmatmul.mubr.bf16.gmra.mrb[0].mxu0 %v563
    %v2308 = vpop.f32.mrb[0].mxu0
    %v2309 = vadd.f32 %v2180, %v2308
    %v2310 = vpop.f32.mrb[0].mxu0
    %v2311 = vpop.f32.mrb[0].mxu0
    %v2312 = vadd.f32 %v2183, %v2311
    %v2313 = vpop.f32.mrb[0].mxu0
    %2314 = vmatprep.mubr.bf16.mxu0 0
    %2315 = vmatmul.mubr.bf16.gmra.mrb[0].mxu0 %v564
    %v2316 = vpop.f32.mrb[0].mxu0
    %v2317 = vadd.f32 %v2188, %v2316
    %v2318 = vpop.f32.mrb[0].mxu0
    %v2319 = vpop.f32.mrb[0].mxu0
    %v2320 = vadd.f32 %v2191, %v2319
    %v2321 = vpop.f32.mrb[0].mxu0
    %2322 = vmatprep.mubr.bf16.mxu0 0
    %2323 = vmatmul.mubr.bf16.gmra.mrb[0].mxu0 %v565
    %v2324 = vpop.f32.mrb[0].mxu0
    %v2325 = vadd.f32 %v2196, %v2324
    %v2326 = vpop.f32.mrb[0].mxu0
    %v2327 = vpop.f32.mrb[0].mxu0
    %v2328 = vadd.f32 %v2199, %v2327
    %v2329 = vpop.f32.mrb[0].mxu0
    %2330 = vmatprep.mubr.bf16.mxu0 0
    %2331 = vmatmul.mubr.bf16.gmra.mrb[0].mxu0 %v566
    %v2332 = vpop.f32.mrb[0].mxu0
    %v2333 = vadd.f32 %v2204, %v2332
    %v2334 = vpop.f32.mrb[0].mxu0
    %v2335 = vpop.f32.mrb[0].mxu0
    %v2336 = vadd.f32 %v2207, %v2335
    %v2337 = vpop.f32.mrb[0].mxu0
    %2338 = vmatprep.mubr.bf16.mxu0 0
    %2339 = vmatmul.mubr.bf16.gmra.mrb[0].mxu0 %v567
    %v2340 = vpop.f32.mrb[0].mxu0
    %v2341 = vadd.f32 %v2212, %v2340
    %v2342 = vpop.f32.mrb[0].mxu0
    %v2343 = vpop.f32.mrb[0].mxu0
    %v2344 = vadd.f32 %v2215, %v2343
    %v2345 = vpop.f32.mrb[0].mxu0
    %2346 = vmatprep.mubr.bf16.mxu0 0
    %2347 = vmatmul.mubr.bf16.gmra.mrb[0].mxu0 %v568
    %v2348 = vpop.f32.mrb[0].mxu0
    %v2349 = vadd.f32 %v2220, %v2348
    %v2350 = vpop.f32.mrb[0].mxu0
    %v2351 = vpop.f32.mrb[0].mxu0
    %v2352 = vadd.f32 %v2223, %v2351
    %v2353 = vpop.f32.mrb[0].mxu0
    %2354 = vmatprep.mubr.bf16.mxu0 0
    %2355 = vmatmul.mubr.bf16.gmra.mrb[0].mxu0 %v569
    %v2356 = vpop.f32.mrb[0].mxu0
    %v2357 = vadd.f32 %v2228, %v2356
    %v2358 = vpop.f32.mrb[0].mxu0
    %v2359 = vpop.f32.mrb[0].mxu0
    %v2360 = vadd.f32 %v2231, %v2359
    %v2361 = vpop.f32.mrb[0].mxu0
    %2362 = vmatprep.mubr.bf16.mxu0 0
    %2363 = vmatmul.mubr.bf16.gmra.mrb[0].mxu0 %v570
    %v2364 = vpop.f32.mrb[0].mxu0
    %v2365 = vadd.f32 %v2236, %v2364
    %v2366 = vpop.f32.mrb[0].mxu0
    %v2367 = vpop.f32.mrb[0].mxu0
    %v2368 = vadd.f32 %v2239, %v2367
    %v2369 = vpop.f32.mrb[0].mxu0
    %2370 = vmatprep.mubr.bf16.mxu0 0
    %2371 = vmatmul.mubr.bf16.gmra.mrb[0].mxu0 %v571
    %v2372 = vpop.f32.mrb[0].mxu0
    %v2373 = vadd.f32 %v2244, %v2372
    %v2374 = vpop.f32.mrb[0].mxu0
    %v2375 = vpop.f32.mrb[0].mxu0
    %v2376 = vadd.f32 %v2247, %v2375
    %v2377 = vpop.f32.mrb[0].mxu0
    %2378 = vdwg.mxu0
    %v2379 = vmax.f32 %v2285, %v2301
    %v2380 = vmax.f32 %v2293, %v2309
    %v2381 = vmax.f32 %v2379, %v2317
    %v2382 = vmax.f32 %v2380, %v2325
    %v2383 = vmax.f32 %v2381, %v2333
    %v2384 = vmax.f32 %v2382, %v2341
    %v2385 = vmax.f32 %v2383, %v2349
    %v2386 = vmax.f32 %v2384, %v2357
    %v2387 = vmax.f32 %v2385, %v2365
    %v2388 = vmax.f32 %v2386, %v2373
    %v2389 = vmax.f32 %v2387, %v2388
    %v2390 = vmax.f32 %v2288, %v2304
    %v2391 = vmax.f32 %v2296, %v2312
    %v2392 = vmax.f32 %v2390, %v2320
    %v2393 = vmax.f32 %v2391, %v2328
    %v2394 = vmax.f32 %v2392, %v2336
    %v2395 = vmax.f32 %v2393, %v2344
    %v2396 = vmax.f32 %v2394, %v2352
    %v2397 = vmax.f32 %v2395, %v2360
    %v2398 = vmax.f32 %v2396, %v2368
    %v2399 = vmax.f32 %v2397, %v2376
    %v2400 = vmax.f32 %v2398, %v2399
    %v2401 = vld [vmem:[%s2 + $0x2] sm:$0x1]
    %v2403 = vlaneseq
    %v2404 = vshrl.u32 %v2403, 7
    %v2405 = vsub.s32 0, %v2404
    %v2406 = vrot.slane %v2401, %v2405
    %v2408 = vadd.f32 %v2389, %v2406
    %v2409 = vadd.f32 %v2400, %v2406
    %v2410 = vmax.f32 %v2408, 0.0
    %v2411 = vmax.f32 %v2409, 0.0
    %2412 = vst [vmem:[#allocation7 + $0x10] sm:$0xff] %v2410
    %2413 = vst [vmem:[#allocation7 + $0x28] sm:$0xff] %v2411
    // Predicated region
    $region22: #{tpu_custom_call.1} parent=1 // pred_check
      _
    $region23: #{tpu_custom_call.1} parent=1 // pred_check_branch
      %2415 = sbr.rel (0) target = $region25
    $region24: #{tpu_custom_call.1} parent=1 // pred_region
      %s2417 = ssub.s32 768, 768
      %2418 = vsyncadd [#allocation4], %s2417
      %s2419 = sshll.u32 [#allocation7], 4
      %s2420 = int_to_ptr.vmem [resolvable:$true] %s2419
      %2425 = dma.vmem_to_hbm [thread:$0]  %s2420, 768, %s3, [#allocation4], 384, 384, 24
    $region25: #{tpu_custom_call.1} parent=1 // pred_fallthru
      _
    // Predicated region
    $region26: #{tpu_custom_call.1} parent=1 // pred_check
      _
    $region27: #{tpu_custom_call.1} parent=1 // pred_check_branch
      %2427 = sbr.rel (0) target = $region29
    $region28: #{tpu_custom_call.1} parent=1 // pred_region
      %2428 = dma.done [#allocation4], 768
    $region29: #{tpu_custom_call.1} parent=1 // pred_fallthru
      _
    %2429 = vsyncpa [#allocation3], 1
    %2430 = vsyncpa [#allocation6], 1
    %2431 = vsyncpa [#allocation4], 1

</llo_original>
